<compile_context>
chip_gen: v6e
topology: v6e:2x2x1
jax: 0.10.0
libtpu: 0.0.40
codegen_flags: <defaults>
</compile_context>

<pallas_src>
import jax
import jax.numpy as jnp
import numpy as np
from jax.experimental import pallas as pl
from jax.experimental.pallas import tpu as pltpu


# ------------------------------ helpers ---------------------------------------
def _round_up(n, m=128):
    return ((n + m - 1) // m) * m


def _pad2d(a, rows, cols):
    r, c = a.shape
    return jnp.pad(a, ((0, rows - r), (0, cols - c)))


# ------------------------------- wrapper --------------------------------------
def vade_forward(x, eps, params, *, tile_b=128, mxu_dtype=jnp.bfloat16):
    """Runs the full VaDE forward pass in one Pallas kernel, tiled over batch.

    Returns (x_hat, latent, means, log_vars), all float32 with original shapes.
    """
    B, D = x.shape
    L = eps.shape[1]
    H = params["we1"].shape[1]

    # ---- batch tile: as large as possible while dividing B ----
    tile_b = max(8, min(tile_b, B))
    while B % tile_b:
        tile_b //= 2
    assert tile_b >= 1 and B % tile_b == 0

    # ---- lane-pad feature dims to multiples of 128 (zero padding is exact) ----
    Dp, Hp, Lp = _round_up(D), _round_up(H), _round_up(L)

    f32 = jnp.float32
    xp = _pad2d(x.astype(f32), B, Dp)
    epsp = _pad2d(eps.astype(f32), B, Lp)   # padded eps lanes are 0 -> padded z lanes are 0

    def w(name, rows, cols):
        # weights: zero-pad, store in HBM as bf16 (MXU operand dtype)
        return _pad2d(params[name].astype(f32), rows, cols).astype(mxu_dtype)

    def b(name, cols):
        # biases: zero-pad, keep f32 (added to the f32 accumulator)
        return _pad2d(params[name].astype(f32), 1, cols)

    we1, be1 = w("we1", Dp, Hp), b("be1", Hp)
    we2, be2 = w("we2", Hp, Hp), b("be2", Hp)
    # fuse mu / log_var projections into one (Hp, 2*Lp) matmul
    wmulv = jnp.concatenate([w("wmu", Hp, Lp), w("wlv", Hp, Lp)], axis=1)
    bmulv = jnp.concatenate([b("bmu", Lp), b("blv", Lp)], axis=1)
    wd1, bd1 = w("wd1", Lp, Hp), b("bd1", Hp)
    wd2, bd2 = w("wd2", Hp, Hp), b("bd2", Hp)
    wd3, bd3 = w("wd3", Hp, Dp), b("bd3", Dp)

    # --------------------------- Pallas kernel --------------------------------
    def kernel(x_ref, eps_ref,
               we1_ref, be1_ref, we2_ref, be2_ref, wmulv_ref, bmulv_ref,
               wd1_ref, bd1_ref, wd2_ref, bd2_ref, wd3_ref, bd3_ref,
               xhat_ref, lat_ref):
        def mm(a_f32, w_ref, b_ref):
            # cast activation to the MXU dtype only at the matmul boundary;
            # accumulate and do all elementwise math in f32.
            return jnp.dot(a_f32.astype(mxu_dtype), w_ref[...],
                           preferred_element_type=jnp.float32) + b_ref[...]

        x_t = x_ref[...]                                            # (TB, Dp) f32

        # ---- Encoder ----
        h1 = jnp.maximum(mm(x_t, we1_ref, be1_ref), 0.0)
        h2 = jnp.maximum(mm(h1, we2_ref, be2_ref), 0.0)
        mulv = mm(h2, wmulv_ref, bmulv_ref)                         # (TB, 2*Lp)
        mu = mulv[:, :Lp]
        lv = mulv[:, Lp:]

        # ---- Reparameterize: z = mu + eps * exp(0.5 * log_var) (f32, EUP exp) ----
        z = mu + eps_ref[...] * jnp.exp(0.5 * lv)

        # ---- Decoder ----
        d1 = jnp.maximum(mm(z, wd1_ref, bd1_ref), 0.0)
        d2 = jnp.maximum(mm(d1, wd2_ref, bd2_ref), 0.0)
        xhat_ref[...] = jax.nn.sigmoid(mm(d2, wd3_ref, bd3_ref))

        # lane-dense packed latent output: [z | mu | log_var], 128-aligned slices
        lat_ref[:, 0:Lp] = z
        lat_ref[:, Lp:2 * Lp] = mu
        lat_ref[:, 2 * Lp:3 * Lp] = lv

    # ------------------------------ specs --------------------------------------
    def batch_spec(cols):
        return pl.BlockSpec((tile_b, cols), lambda i: (i, 0))

    def full_spec(shape):
        # constant block index -> Pallas keeps the block resident across steps
        return pl.BlockSpec(shape, lambda i: (0, 0))

    in_specs = [
        batch_spec(Dp),                         # x
        batch_spec(Lp),                         # eps
        full_spec((Dp, Hp)), full_spec((1, Hp)),          # we1, be1
        full_spec((Hp, Hp)), full_spec((1, Hp)),          # we2, be2
        full_spec((Hp, 2 * Lp)), full_spec((1, 2 * Lp)),  # fused wmu|wlv, bmu|blv
        full_spec((Lp, Hp)), full_spec((1, Hp)),          # wd1, bd1
        full_spec((Hp, Hp)), full_spec((1, Hp)),          # wd2, bd2
        full_spec((Hp, Dp)), full_spec((1, Dp)),          # wd3, bd3
    ]
    out_specs = [batch_spec(Dp), batch_spec(3 * Lp)]
    out_shape = [
        jax.ShapeDtypeStruct((B, Dp), jnp.float32),      # x_hat (padded)
        jax.ShapeDtypeStruct((B, 3 * Lp), jnp.float32),  # packed [z | mu | log_var]
    ]

    # ---------------------- cost estimate & compiler params --------------------
    mm_flops = 2 * B * (Dp * Hp + Hp * Hp + Hp * 2 * Lp + Lp * Hp + Hp * Hp + Hp * Dp)
    weight_arrays = [we1, be1, we2, be2, wmulv, bmulv, wd1, bd1, wd2, bd2, wd3, bd3]
    bytes_accessed = sum(int(np.prod(t.shape)) * t.dtype.itemsize for t in weight_arrays)
    bytes_accessed += (B * Dp + B * Lp) * 4          # x, eps in
    bytes_accessed += (B * Dp + B * 3 * Lp) * 4      # outputs
    cost = pl.CostEstimate(flops=int(mm_flops),
                           transcendentals=int(B * (Lp + Dp)),
                           bytes_accessed=int(bytes_accessed))

    fn = pl.pallas_call(
        kernel,
        grid_spec=pltpu.PrefetchScalarGridSpec(
            num_scalar_prefetch=0,
            grid=(B // tile_b,),
            in_specs=in_specs,
            out_specs=out_specs,
        ),
        out_shape=out_shape,
        cost_estimate=cost,
        compiler_params=pltpu.CompilerParams(
            dimension_semantics=("parallel",),       # batch axis shards across TCs (v7x)
            vmem_limit_bytes=48 * 1024 * 1024,       # safe on v5e/v6e (128 MiB) and v7x (64 MiB)
        ),
    )

    xhat_p, lat_p = fn(xp, epsp,
                       we1, be1, we2, be2, wmulv, bmulv,
                       wd1, bd1, wd2, bd2, wd3, bd3)

    # un-pad / un-pack in the wrapper (free layout plumbing)
    x_hat = xhat_p[:, :D]
    z = lat_p[:, 0:L]
    mu = lat_p[:, Lp:Lp + L]
    lv = lat_p[:, 2 * Lp:2 * Lp + L]
    return x_hat, z, mu, lv


# -------------------------- deterministic params ------------------------------
def init_params(key, D, H, L, n_clusters):
    ks = jax.random.split(key, 8)

    def lin(k, fan_in, fan_out):
        w = jax.random.normal(k, (fan_in, fan_out), jnp.float32) * (1.0 / np.sqrt(fan_in))
        b = jnp.zeros((1, fan_out), jnp.float32)
        return w, b

    we1, be1 = lin(ks[0], D, H)
    we2, be2 = lin(ks[1], H, H)
    wmu, bmu = lin(ks[2], H, L)
    wlv, blv = lin(ks[3], H, L)
    wd1, bd1 = lin(ks[4], L, H)
    wd2, bd2 = lin(ks[5], H, H)
    wd3, bd3 = lin(ks[6], H, D)

    return dict(
        we1=we1, be1=be1, we2=we2, be2=be2,
        wmu=wmu, bmu=bmu, wlv=wlv, blv=blv,
        wd1=wd1, bd1=bd1, wd2=wd2, bd2=bd2, wd3=wd3, bd3=bd3,
        # VaDE clustering prior parameters (not used in forward, kept for parity
        # with the nn.Parameter initialization in __init__):
        pi_prior=jnp.full((n_clusters,), 1.0 / n_clusters, jnp.float32),
        mu_prior=jnp.zeros((n_clusters, L), jnp.float32),
        log_var_prior=jnp.zeros((n_clusters, L), jnp.float32),
    )


# --------------------------- pure-JAX reference --------------------------------
def vade_forward_ref(x, eps, p, mxu_dtype=jnp.bfloat16):
    """Reference with the same precision policy as the kernel (bf16 MXU, f32 acc)."""
    def mm(a, w_):
        return jnp.dot(a.astype(mxu_dtype), w_.astype(mxu_dtype),
                       preferred_element_type=jnp.float32)

    relu = lambda t: jnp.maximum(t, 0.0)
    h1 = relu(mm(x, p["we1"]) + p["be1"])
    h2 = relu(mm(h1, p["we2"]) + p["be2"])
    mu = mm(h2, p["wmu"]) + p["bmu"]
    lv = mm(h2, p["wlv"]) + p["blv"]
    z = mu + eps * jnp.exp(0.5 * lv)
    d1 = relu(mm(z, p["wd1"]) + p["bd1"])
    d2 = relu(mm(d1, p["wd2"]) + p["bd2"])
    x_hat = jax.nn.sigmoid(mm(d2, p["wd3"]) + p["bd3"])
    return x_hat, z, mu, lv


if __name__ == "__main__":
    # Odd (unaligned) feature sizes on purpose so the lane-padding path is exercised;
    # B=256 with tile_b=128 gives 2 parallel grid steps (uses both TCs on v7x).
    B, D, H, L, K = 256, 200, 120, 10, 8

    key = jax.random.PRNGKey(0)
    k_x, k_eps, k_p = jax.random.split(key, 3)

    x = jax.random.uniform(k_x, (B, D), jnp.float32)         # BCE-compatible inputs
    eps = jax.random.normal(k_eps, (B, L), jnp.float32)      # reparameterization noise
    params = init_params(k_p, D, H, L, K)

    outs = vade_forward(x, eps, params, tile_b=128)
    outs = jax.block_until_ready(outs)
    x_hat, latent, means, log_vars = outs

    # sanity check against a pure-JAX reference with the same precision policy
    refs = vade_forward_ref(x, eps, params)
    for o, r in zip(outs, refs):
        np.testing.assert_allclose(np.asarray(o), np.asarray(r), rtol=5e-3, atol=5e-3)

    print("KERNEL_OK")
</pallas_src>

<mosaic_0001>
module attributes {stable_mosaic.version = 11 : i64} {
  func.func @kernel(%arg0: i32, %arg1: memref<128x256xf32, #tpu.memory_space<vmem>>, %arg2: memref<128x128xf32, #tpu.memory_space<vmem>>, %arg3: memref<256x128xbf16, #tpu.memory_space<vmem>>, %arg4: memref<1x128xf32, #tpu.memory_space<vmem>>, %arg5: memref<128x128xbf16, #tpu.memory_space<vmem>>, %arg6: memref<1x128xf32, #tpu.memory_space<vmem>>, %arg7: memref<128x256xbf16, #tpu.memory_space<vmem>>, %arg8: memref<1x256xf32, #tpu.memory_space<vmem>>, %arg9: memref<128x128xbf16, #tpu.memory_space<vmem>>, %arg10: memref<1x128xf32, #tpu.memory_space<vmem>>, %arg11: memref<128x128xbf16, #tpu.memory_space<vmem>>, %arg12: memref<1x128xf32, #tpu.memory_space<vmem>>, %arg13: memref<128x256xbf16, #tpu.memory_space<vmem>>, %arg14: memref<1x256xf32, #tpu.memory_space<vmem>>, %arg15: memref<128x256xf32, #tpu.memory_space<vmem>>, %arg16: memref<128x384xf32, #tpu.memory_space<vmem>>) attributes {dimension_semantics = [#tpu.dimension_semantics<parallel>], iteration_bounds = array<i64: 2>, scalar_prefetch = 0 : i64, scratch_operands = 0 : i64, tpu.core_type = #tpu.core_type<tc>, window_params = [{transform_indices = @transform_0, window_bounds = array<i64: 128, 256>}, {transform_indices = @transform_1, window_bounds = array<i64: 128, 128>}, {pipeline_mode = #tpu.pipeline_mode<synchronous>, transform_indices = @transform_2, window_bounds = array<i64: 256, 128>}, {pipeline_mode = #tpu.pipeline_mode<synchronous>, transform_indices = @transform_3, window_bounds = array<i64: 1, 128>}, {pipeline_mode = #tpu.pipeline_mode<synchronous>, transform_indices = @transform_4, window_bounds = array<i64: 128, 128>}, {pipeline_mode = #tpu.pipeline_mode<synchronous>, transform_indices = @transform_5, window_bounds = array<i64: 1, 128>}, {pipeline_mode = #tpu.pipeline_mode<synchronous>, transform_indices = @transform_6, window_bounds = array<i64: 128, 256>}, {pipeline_mode = #tpu.pipeline_mode<synchronous>, transform_indices = @transform_7, window_bounds = array<i64: 1, 256>}, {pipeline_mode = #tpu.pipeline_mode<synchronous>, transform_indices = @transform_8, window_bounds = array<i64: 128, 128>}, {pipeline_mode = #tpu.pipeline_mode<synchronous>, transform_indices = @transform_9, window_bounds = array<i64: 1, 128>}, {pipeline_mode = #tpu.pipeline_mode<synchronous>, transform_indices = @transform_10, window_bounds = array<i64: 128, 128>}, {pipeline_mode = #tpu.pipeline_mode<synchronous>, transform_indices = @transform_11, window_bounds = array<i64: 1, 128>}, {pipeline_mode = #tpu.pipeline_mode<synchronous>, transform_indices = @transform_12, window_bounds = array<i64: 128, 256>}, {pipeline_mode = #tpu.pipeline_mode<synchronous>, transform_indices = @transform_13, window_bounds = array<i64: 1, 256>}, {transform_indices = @transform_14, window_bounds = array<i64: 128, 256>}, {transform_indices = @transform_15, window_bounds = array<i64: 128, 384>}]} {
    %c0 = arith.constant 0 : index
    %c0_0 = arith.constant 0 : index
    %0 = vector.load %arg1[%c0, %c0_0] : memref<128x256xf32, #tpu.memory_space<vmem>>, vector<128x256xf32>
    %1 = arith.truncf %0 : vector<128x256xf32> to vector<128x256xbf16>
    %c0_1 = arith.constant 0 : index
    %c0_2 = arith.constant 0 : index
    %2 = vector.load %arg3[%c0_1, %c0_2] : memref<256x128xbf16, #tpu.memory_space<vmem>>, vector<256x128xbf16>
    %cst = arith.constant dense<0.000000e+00> : vector<128x128xf32>
    %3 = tpu.matmul %1, %2, %cst {dimension_numbers = #tpu.dot_dimension_numbers<[1], [0], [0], [1], [0, 0, 1, 1], [], []>} : vector<128x256xbf16>, vector<256x128xbf16>, vector<128x128xf32> -> vector<128x128xf32>
    %c0_3 = arith.constant 0 : index
    %c0_4 = arith.constant 0 : index
    %4 = vector.load %arg4[%c0_3, %c0_4] : memref<1x128xf32, #tpu.memory_space<vmem>>, vector<1x128xf32>
    %5 = vector.broadcast %4 : vector<1x128xf32> to vector<128x128xf32>
    %6 = arith.addf %3, %5 : vector<128x128xf32>
    %cst_5 = arith.constant 0.000000e+00 : f32
    %7 = vector.broadcast %cst_5 : f32 to vector<128x128xf32>
    %8 = arith.maximumf %6, %7 : vector<128x128xf32>
    %9 = arith.truncf %8 : vector<128x128xf32> to vector<128x128xbf16>
    %c0_6 = arith.constant 0 : index
    %c0_7 = arith.constant 0 : index
    %10 = vector.load %arg5[%c0_6, %c0_7] : memref<128x128xbf16, #tpu.memory_space<vmem>>, vector<128x128xbf16>
    %cst_8 = arith.constant dense<0.000000e+00> : vector<128x128xf32>
    %11 = tpu.matmul %9, %10, %cst_8 {dimension_numbers = #tpu.dot_dimension_numbers<[1], [0], [0], [1], [0, 0, 1, 1], [], []>} : vector<128x128xbf16>, vector<128x128xbf16>, vector<128x128xf32> -> vector<128x128xf32>
    %c0_9 = arith.constant 0 : index
    %c0_10 = arith.constant 0 : index
    %12 = vector.load %arg6[%c0_9, %c0_10] : memref<1x128xf32, #tpu.memory_space<vmem>>, vector<1x128xf32>
    %13 = vector.broadcast %12 : vector<1x128xf32> to vector<128x128xf32>
    %14 = arith.addf %11, %13 : vector<128x128xf32>
    %cst_11 = arith.constant 0.000000e+00 : f32
    %15 = vector.broadcast %cst_11 : f32 to vector<128x128xf32>
    %16 = arith.maximumf %14, %15 : vector<128x128xf32>
    %17 = arith.truncf %16 : vector<128x128xf32> to vector<128x128xbf16>
    %c0_12 = arith.constant 0 : index
    %c0_13 = arith.constant 0 : index
    %18 = vector.load %arg7[%c0_12, %c0_13] : memref<128x256xbf16, #tpu.memory_space<vmem>>, vector<128x256xbf16>
    %cst_14 = arith.constant dense<0.000000e+00> : vector<128x256xf32>
    %19 = tpu.matmul %17, %18, %cst_14 {dimension_numbers = #tpu.dot_dimension_numbers<[1], [0], [0], [1], [0, 0, 1, 1], [], []>} : vector<128x128xbf16>, vector<128x256xbf16>, vector<128x256xf32> -> vector<128x256xf32>
    %c0_15 = arith.constant 0 : index
    %c0_16 = arith.constant 0 : index
    %20 = vector.load %arg8[%c0_15, %c0_16] : memref<1x256xf32, #tpu.memory_space<vmem>>, vector<1x256xf32>
    %21 = vector.broadcast %20 : vector<1x256xf32> to vector<128x256xf32>
    %22 = arith.addf %19, %21 : vector<128x256xf32>
    %23 = vector.extract_strided_slice %22 {offsets = [0, 0], sizes = [128, 128], strides = [1, 1]} : vector<128x256xf32> to vector<128x128xf32>
    %24 = vector.extract_strided_slice %22 {offsets = [0, 128], sizes = [128, 128], strides = [1, 1]} : vector<128x256xf32> to vector<128x128xf32>
    %c0_17 = arith.constant 0 : index
    %c0_18 = arith.constant 0 : index
    %25 = vector.load %arg2[%c0_17, %c0_18] : memref<128x128xf32, #tpu.memory_space<vmem>>, vector<128x128xf32>
    %cst_19 = arith.constant 5.000000e-01 : f32
    %26 = vector.broadcast %cst_19 : f32 to vector<128x128xf32>
    %27 = arith.mulf %26, %24 : vector<128x128xf32>
    %28 = math.exp %27 : vector<128x128xf32>
    %29 = arith.mulf %25, %28 : vector<128x128xf32>
    %30 = arith.addf %23, %29 : vector<128x128xf32>
    %31 = arith.truncf %30 : vector<128x128xf32> to vector<128x128xbf16>
    %c0_20 = arith.constant 0 : index
    %c0_21 = arith.constant 0 : index
    %32 = vector.load %arg9[%c0_20, %c0_21] : memref<128x128xbf16, #tpu.memory_space<vmem>>, vector<128x128xbf16>
    %cst_22 = arith.constant dense<0.000000e+00> : vector<128x128xf32>
    %33 = tpu.matmul %31, %32, %cst_22 {dimension_numbers = #tpu.dot_dimension_numbers<[1], [0], [0], [1], [0, 0, 1, 1], [], []>} : vector<128x128xbf16>, vector<128x128xbf16>, vector<128x128xf32> -> vector<128x128xf32>
    %c0_23 = arith.constant 0 : index
    %c0_24 = arith.constant 0 : index
    %34 = vector.load %arg10[%c0_23, %c0_24] : memref<1x128xf32, #tpu.memory_space<vmem>>, vector<1x128xf32>
    %35 = vector.broadcast %34 : vector<1x128xf32> to vector<128x128xf32>
    %36 = arith.addf %33, %35 : vector<128x128xf32>
    %cst_25 = arith.constant 0.000000e+00 : f32
    %37 = vector.broadcast %cst_25 : f32 to vector<128x128xf32>
    %38 = arith.maximumf %36, %37 : vector<128x128xf32>
    %39 = arith.truncf %38 : vector<128x128xf32> to vector<128x128xbf16>
    %c0_26 = arith.constant 0 : index
    %c0_27 = arith.constant 0 : index
    %40 = vector.load %arg11[%c0_26, %c0_27] : memref<128x128xbf16, #tpu.memory_space<vmem>>, vector<128x128xbf16>
    %cst_28 = arith.constant dense<0.000000e+00> : vector<128x128xf32>
    %41 = tpu.matmul %39, %40, %cst_28 {dimension_numbers = #tpu.dot_dimension_numbers<[1], [0], [0], [1], [0, 0, 1, 1], [], []>} : vector<128x128xbf16>, vector<128x128xbf16>, vector<128x128xf32> -> vector<128x128xf32>
    %c0_29 = arith.constant 0 : index
    %c0_30 = arith.constant 0 : index
    %42 = vector.load %arg12[%c0_29, %c0_30] : memref<1x128xf32, #tpu.memory_space<vmem>>, vector<1x128xf32>
    %43 = vector.broadcast %42 : vector<1x128xf32> to vector<128x128xf32>
    %44 = arith.addf %41, %43 : vector<128x128xf32>
    %cst_31 = arith.constant 0.000000e+00 : f32
    %45 = vector.broadcast %cst_31 : f32 to vector<128x128xf32>
    %46 = arith.maximumf %44, %45 : vector<128x128xf32>
    %47 = arith.truncf %46 : vector<128x128xf32> to vector<128x128xbf16>
    %c0_32 = arith.constant 0 : index
    %c0_33 = arith.constant 0 : index
    %48 = vector.load %arg13[%c0_32, %c0_33] : memref<128x256xbf16, #tpu.memory_space<vmem>>, vector<128x256xbf16>
    %cst_34 = arith.constant dense<0.000000e+00> : vector<128x256xf32>
    %49 = tpu.matmul %47, %48, %cst_34 {dimension_numbers = #tpu.dot_dimension_numbers<[1], [0], [0], [1], [0, 0, 1, 1], [], []>} : vector<128x128xbf16>, vector<128x256xbf16>, vector<128x256xf32> -> vector<128x256xf32>
    %c0_35 = arith.constant 0 : index
    %c0_36 = arith.constant 0 : index
    %50 = vector.load %arg14[%c0_35, %c0_36] : memref<1x256xf32, #tpu.memory_space<vmem>>, vector<1x256xf32>
    %51 = vector.broadcast %50 : vector<1x256xf32> to vector<128x256xf32>
    %52 = arith.addf %49, %51 : vector<128x256xf32>
    %53 = arith.negf %52 : vector<128x256xf32>
    %54 = math.exp %53 : vector<128x256xf32>
    %cst_37 = arith.constant 1.000000e+00 : f32
    %55 = vector.broadcast %cst_37 : f32 to vector<128x256xf32>
    %56 = arith.addf %55, %54 : vector<128x256xf32>
    %57 = arith.divf %55, %56 : vector<128x256xf32>
    %c0_38 = arith.constant 0 : index
    %c0_39 = arith.constant 0 : index
    %58 = vector.load %arg15[%c0_38, %c0_39] : memref<128x256xf32, #tpu.memory_space<vmem>>, vector<128x256xf32>
    tpu.vector_store %arg15[%c0_38, %c0_39], %57 {strides = array<i32>} : memref<128x256xf32, #tpu.memory_space<vmem>>, vector<128x256xf32>,
    %c0_40 = arith.constant 0 : index
    %c0_41 = arith.constant 0 : index
    %59 = vector.load %arg16[%c0_40, %c0_41] : memref<128x384xf32, #tpu.memory_space<vmem>>, vector<128x128xf32>
    tpu.vector_store %arg16[%c0_40, %c0_41], %30 {strides = array<i32>} : memref<128x384xf32, #tpu.memory_space<vmem>>, vector<128x128xf32>,
    %c0_42 = arith.constant 0 : index
    %c128 = arith.constant 128 : index
    %60 = vector.load %arg16[%c0_42, %c128] : memref<128x384xf32, #tpu.memory_space<vmem>>, vector<128x128xf32>
    tpu.vector_store %arg16[%c0_42, %c128], %23 {strides = array<i32>} : memref<128x384xf32, #tpu.memory_space<vmem>>, vector<128x128xf32>,
    %c0_43 = arith.constant 0 : index
    %c256 = arith.constant 256 : index
    %61 = vector.load %arg16[%c0_43, %c256] : memref<128x384xf32, #tpu.memory_space<vmem>>, vector<128x128xf32>
    tpu.vector_store %arg16[%c0_43, %c256], %24 {strides = array<i32>} : memref<128x384xf32, #tpu.memory_space<vmem>>, vector<128x128xf32>,
    return
  }
  func.func @transform_0(%arg0: i32) -> (i32, i32) {
    %c0_i32 = arith.constant 0 : i32
    %c0_i32_0 = arith.constant 0 : i32
    return %arg0, %c0_i32 : i32, i32
  }
  func.func @transform_1(%arg0: i32) -> (i32, i32) {
    %c0_i32 = arith.constant 0 : i32
    %c0_i32_0 = arith.constant 0 : i32
    return %arg0, %c0_i32 : i32, i32
  }
  func.func @transform_2(%arg0: i32) -> (i32, i32) {
    %c0_i32 = arith.constant 0 : i32
    %c0_i32_0 = arith.constant 0 : i32
    %c0_i32_1 = arith.constant 0 : i32
    return %c0_i32, %c0_i32_0 : i32, i32
  }
  func.func @transform_3(%arg0: i32) -> (i32, i32) {
    %c0_i32 = arith.constant 0 : i32
    %c0_i32_0 = arith.constant 0 : i32
    %c0_i32_1 = arith.constant 0 : i32
    return %c0_i32, %c0_i32_0 : i32, i32
  }
  func.func @transform_4(%arg0: i32) -> (i32, i32) {
    %c0_i32 = arith.constant 0 : i32
    %c0_i32_0 = arith.constant 0 : i32
    %c0_i32_1 = arith.constant 0 : i32
    return %c0_i32, %c0_i32_0 : i32, i32
  }
  func.func @transform_5(%arg0: i32) -> (i32, i32) {
    %c0_i32 = arith.constant 0 : i32
    %c0_i32_0 = arith.constant 0 : i32
    %c0_i32_1 = arith.constant 0 : i32
    return %c0_i32, %c0_i32_0 : i32, i32
  }
  func.func @transform_6(%arg0: i32) -> (i32, i32) {
    %c0_i32 = arith.constant 0 : i32
    %c0_i32_0 = arith.constant 0 : i32
    %c0_i32_1 = arith.constant 0 : i32
    return %c0_i32, %c0_i32_0 : i32, i32
  }
  func.func @transform_7(%arg0: i32) -> (i32, i32) {
    %c0_i32 = arith.constant 0 : i32
    %c0_i32_0 = arith.constant 0 : i32
    %c0_i32_1 = arith.constant 0 : i32
    return %c0_i32, %c0_i32_0 : i32, i32
  }
  func.func @transform_8(%arg0: i32) -> (i32, i32) {
    %c0_i32 = arith.constant 0 : i32
    %c0_i32_0 = arith.constant 0 : i32
    %c0_i32_1 = arith.constant 0 : i32
    return %c0_i32, %c0_i32_0 : i32, i32
  }
  func.func @transform_9(%arg0: i32) -> (i32, i32) {
    %c0_i32 = arith.constant 0 : i32
    %c0_i32_0 = arith.constant 0 : i32
    %c0_i32_1 = arith.constant 0 : i32
    return %c0_i32, %c0_i32_0 : i32, i32
  }
  func.func @transform_10(%arg0: i32) -> (i32, i32) {
    %c0_i32 = arith.constant 0 : i32
    %c0_i32_0 = arith.constant 0 : i32
    %c0_i32_1 = arith.constant 0 : i32
    return %c0_i32, %c0_i32_0 : i32, i32
  }
  func.func @transform_11(%arg0: i32) -> (i32, i32) {
    %c0_i32 = arith.constant 0 : i32
    %c0_i32_0 = arith.constant 0 : i32
    %c0_i32_1 = arith.constant 0 : i32
    return %c0_i32, %c0_i32_0 : i32, i32
  }
  func.func @transform_12(%arg0: i32) -> (i32, i32) {
    %c0_i32 = arith.constant 0 : i32
    %c0_i32_0 = arith.constant 0 : i32
    %c0_i32_1 = arith.constant 0 : i32
    return %c0_i32, %c0_i32_0 : i32, i32
  }
  func.func @transform_13(%arg0: i32) -> (i32, i32) {
    %c0_i32 = arith.constant 0 : i32
    %c0_i32_0 = arith.constant 0 : i32
    %c0_i32_1 = arith.constant 0 : i32
    return %c0_i32, %c0_i32_0 : i32, i32
  }
  func.func @transform_14(%arg0: i32) -> (i32, i32) {
    %c0_i32 = arith.constant 0 : i32
    %c0_i32_0 = arith.constant 0 : i32
    return %arg0, %c0_i32 : i32, i32
  }
  func.func @transform_15(%arg0: i32) -> (i32, i32) {
    %c0_i32 = arith.constant 0 : i32
    %c0_i32_0 = arith.constant 0 : i32
    return %arg0, %c0_i32 : i32, i32
  }
}

</mosaic_0001>

<llo_original>
// kernel: tpu_custom_call.1
$region0: #{tpu_custom_call.1}
  #allocation0 [shape = 'u32[]', space=smem, size = 0x4, offset = 0x4, fixed_abs, tag = 'smem constant byte address 0x4 - core index']
  #allocation1 [shape = 'u32[144,128]{1,0:T(1,128)}', space=vmem, size = 0x12000, scoped, tag = 'internal scratch']
  %s0 = inlined_call_operand.hbm [shape: f32[256,256], index: 0, kind: input, shape index: {}]
  %s1 = inlined_call_operand.hbm [shape: f32[256,128], index: 1, kind: input, shape index: {}]
  %s2 = inlined_call_operand.hbm [shape: bf16[256,128], index: 2, kind: input, shape index: {}]
  %s3 = inlined_call_operand.vmem [shape: f32[1,128], index: 3, kind: input, shape index: {}]
  %s4 = inlined_call_operand.hbm [shape: bf16[128,128], index: 4, kind: input, shape index: {}]
  %s5 = inlined_call_operand.vmem [shape: f32[1,128], index: 5, kind: input, shape index: {}]
  %s6 = inlined_call_operand.hbm [shape: bf16[128,256], index: 6, kind: input, shape index: {}]
  %s7 = inlined_call_operand.vmem [shape: f32[1,256], index: 7, kind: input, shape index: {}]
  %s8 = inlined_call_operand.hbm [shape: bf16[128,128], index: 8, kind: input, shape index: {}]
  %s9 = inlined_call_operand.vmem [shape: f32[1,128], index: 9, kind: input, shape index: {}]
  %s10 = inlined_call_operand.hbm [shape: bf16[128,128], index: 10, kind: input, shape index: {}]
  %s11 = inlined_call_operand.vmem [shape: f32[1,128], index: 11, kind: input, shape index: {}]
  %s12 = inlined_call_operand.hbm [shape: bf16[128,256], index: 12, kind: input, shape index: {}]
  %s13 = inlined_call_operand.vmem [shape: f32[1,256], index: 13, kind: input, shape index: {}]
  %s14 = inlined_call_operand.hbm [shape: f32[256,256], index: 14, kind: output, shape index: {0}]
  %s15 = inlined_call_operand.hbm [shape: f32[256,384], index: 15, kind: output, shape index: {1}]
  %16 = xla_tuple %s14, %s15
  %s17 = sld [smem:[#allocation0]]
  $region129: #{tpu_custom_call.1} parent=0
    _
  %s19 = ssub.s32 1, %s17
  %s20 = scalar_select 0, %s19, %s17
  $region1: #{tpu_custom_call.1} parent=0
    #allocation2 [shape = 'u8[262144]{0}', space=vmem, size = 0x40000, scoped, tag = 'input window, operand 0']
    #allocation3 [shape = 's32[2]{0}', space=sflag, size = 0x8, scoped, tag = 'scoped memory for tpu_custom_call.1']
    #allocation4 [shape = 's32[2]{0}', space=sflag, size = 0x8, scoped, tag = 'scoped memory for tpu_custom_call.1']
    #allocation5 [shape = 'u8[131072]{0}', space=vmem, size = 0x20000, scoped, tag = 'input window, operand 1']
    #allocation6 [shape = 's32[2]{0}', space=sflag, size = 0x8, scoped, tag = 'scoped memory for tpu_custom_call.1']
    #allocation7 [shape = 'u8[65536]{0}', space=vmem, size = 0x10000, scoped, tag = 'input window, operand 2, single buffered']
    #allocation8 [shape = 'u8[32768]{0}', space=vmem, size = 0x8000, scoped, tag = 'input window, operand 4, single buffered']
    #allocation9 [shape = 's32[1]{0}', space=sflag, size = 0x4, scoped, tag = 'scoped memory for tpu_custom_call.1']
    #allocation10 [shape = 'u8[65536]{0}', space=vmem, size = 0x10000, scoped, tag = 'input window, operand 6, single buffered']
    #allocation11 [shape = 'u8[32768]{0}', space=vmem, size = 0x8000, scoped, tag = 'input window, operand 8, single buffered']
    #allocation12 [shape = 's32[1]{0}', space=sflag, size = 0x4, scoped, tag = 'scoped memory for tpu_custom_call.1']
    #allocation13 [shape = 'u8[32768]{0}', space=vmem, size = 0x8000, scoped, tag = 'input window, operand 10, single buffered']
    #allocation14 [shape = 'u8[65536]{0}', space=vmem, size = 0x10000, scoped, tag = 'input window, operand 12, single buffered']
    #allocation15 [shape = 's32[1]{0}', space=sflag, size = 0x4, scoped, tag = 'scoped memory for tpu_custom_call.1']
    #allocation16 [shape = 'u8[262144]{0}', space=vmem, size = 0x40000, scoped, tag = 'output window, operand 0']
    #allocation17 [shape = 'u8[393216]{0}', space=vmem, size = 0x60000, scoped, tag = 'output window, operand 1']
    #allocation18 [shape = 's32[2]{0}', space=sflag, size = 0x8, scoped, tag = 'scoped memory for tpu_custom_call.1']
    %21 = vsyncpa [#allocation3], 0
    %s22 = scalar_lea.sflag [#allocation3], 1
    %23 = vsyncpa %s22, 0
    %24 = vsyncpa [#allocation6], 0
    %s25 = scalar_lea.sflag [#allocation6], 1
    %26 = vsyncpa %s25, 0
    %27 = vsyncpa [#allocation9], 0
    %28 = vsyncpa [#allocation12], 0
    %29 = vsyncpa [#allocation15], 0
    %30 = vsyncpa [#allocation4], 0
    %s31 = scalar_lea.sflag [#allocation4], 1
    %32 = vsyncpa %s31, 0
    %33 = vsyncpa [#allocation18], 0
    %s34 = scalar_lea.sflag [#allocation18], 1
    %35 = vsyncpa %s34, 0
    loop: start=0, step=1, limit=4
    $region2: #{tpu_custom_call.1} parent=1 // loop_pre_header
      _
    $region3: #{tpu_custom_call.1} parent=1 // loop_header
      %s37 = sphi 0, %s41
      %p38 = scmp.ge.s32.totalorder %s37, 4
      %s47 = sphi 0, %s49
      %s50 = sphi 0, %s47
      %s51 = sphi 0, %s50
      %s67 = sphi 0, %s51
      %s73 = sphi 0, %s75
      %s76 = sphi 0, %s73
      %s77 = sphi 0, %s76
      %s93 = sphi 0, %s77
      %s97 = sphi 0, %s97
      %s99 = sphi 0, %s97
      %s100 = sphi 0, %s99
      %s114 = sphi 0, %s100
      %s118 = sphi 0, %s118
      %s120 = sphi 0, %s118
      %s121 = sphi 0, %s120
      %s135 = sphi 0, %s121
      %s139 = sphi 0, %s139
      %s141 = sphi 0, %s139
      %s142 = sphi 0, %s141
      %s156 = sphi 0, %s142
      %s160 = sphi 0, %s160
      %s162 = sphi 0, %s160
      %s163 = sphi 0, %s162
      %s177 = sphi 0, %s163
      %s181 = sphi 0, %s181
      %s183 = sphi 0, %s181
      %s184 = sphi 0, %s183
      %s198 = sphi 0, %s184
      %s202 = sphi 0, %s202
      %s204 = sphi 0, %s202
      %s205 = sphi 0, %s204
      %s219 = sphi 0, %s205
      %s223 = sphi 0, %s223
      %s225 = sphi 0, %s223
      %s226 = sphi 0, %s225
      %s240 = sphi 0, %s226
      %s244 = sphi 0, %s244
      %s246 = sphi 0, %s244
      %s247 = sphi 0, %s246
      %s261 = sphi 0, %s247
      %s265 = sphi 0, %s265
      %s267 = sphi 0, %s265
      %s268 = sphi 0, %s267
      %s282 = sphi 0, %s268
      %s286 = sphi 0, %s286
      %s288 = sphi 0, %s286
      %s289 = sphi 0, %s288
      %s303 = sphi 0, %s289
      %s307 = sphi 0, %s307
      %s309 = sphi 0, %s307
      %s310 = sphi 0, %s309
      %s324 = sphi 0, %s310
      %s328 = sphi 0, %s328
      %s330 = sphi 0, %s328
      %s331 = sphi 0, %s330
      %s345 = sphi 0, %s331
      %s351 = sphi 0, %s353
      %s354 = sphi 0, %s351
      %s355 = sphi 0, %s354
      %s371 = sphi 0, %s355
      %s377 = sphi 0, %s379
      %s380 = sphi 0, %s377
      %s381 = sphi 0, %s380
      %s397 = sphi 0, %s381
    $region4: #{tpu_custom_call.1} parent=1 // loop_header_branch
      %40 = sbr.rel (%p38) target = $region8
    $region5: #{tpu_custom_call.1} parent=1 // loop_body
      %s42 = ssub.s32 %s37, 1
      %s43 = ssub.s32 %s37, 2
      %s44 = sadd.s32 %s37, 1
      %s45 = ssub.s32 %s37, %s44
      %p46 = scmp.eq.s32.totalorder %s45, 0
      %s48 = sadd.s32 %s47, 1
      %s49 = scalar_select %p46, %s47, %s48
      %p52 = pneg %p46
      %p53 = scmp.eq.s32.totalorder %s37, 1
      %p54 = por %p52, %p53
      %p55 = scmp.ne.s32.totalorder %s47, %s50
      %p56 = scmp.eq.s32.totalorder %s37, 0
      %p57 = por %p55, %p56
      %p58 = scmp.ne.s32.totalorder %s47, %s50
      %p59 = scmp.eq.s32.totalorder %s42, 1
      %p60 = por %p58, %p59
      %p61 = scmp.ne.s32.totalorder %s50, %s51
      %p62 = scmp.eq.s32.totalorder %s42, 0
      %p63 = por %p61, %p62
      %p64 = scmp.ne.s32.totalorder %s50, %s51
      %p65 = scmp.eq.s32.totalorder %s43, 1
      %p66 = por %p64, %p65
      %p68 = scmp.ne.s32.totalorder %s51, %s67
      %p69 = scmp.eq.s32.totalorder %s43, 0
      %p70 = por %p68, %p69
      %s71 = ssub.s32 %s37, %s44
      %p72 = scmp.eq.s32.totalorder %s71, 0
      %s74 = sadd.s32 %s73, 1
      %s75 = scalar_select %p72, %s73, %s74
      %p78 = pneg %p72
      %p79 = scmp.eq.s32.totalorder %s37, 1
      %p80 = por %p78, %p79
      %p81 = scmp.ne.s32.totalorder %s73, %s76
      %p82 = scmp.eq.s32.totalorder %s37, 0
      %p83 = por %p81, %p82
      %p84 = scmp.ne.s32.totalorder %s73, %s76
      %p85 = scmp.eq.s32.totalorder %s42, 1
      %p86 = por %p84, %p85
      %p87 = scmp.ne.s32.totalorder %s76, %s77
      %p88 = scmp.eq.s32.totalorder %s42, 0
      %p89 = por %p87, %p88
      %p90 = scmp.ne.s32.totalorder %s76, %s77
      %p91 = scmp.eq.s32.totalorder %s43, 1
      %p92 = por %p90, %p91
      %p94 = scmp.ne.s32.totalorder %s77, %s93
      %p95 = scmp.eq.s32.totalorder %s43, 0
      %p96 = por %p94, %p95
      %s98 = sadd.s32 %s97, 1
      %p101 = scmp.eq.s32.totalorder %s37, 1
      %p102 = scmp.ne.s32.totalorder %s97, %s99
      %p103 = scmp.eq.s32.totalorder %s37, 0
      %p104 = por %p102, %p103
      %p105 = scmp.ne.s32.totalorder %s97, %s99
      %p106 = scmp.eq.s32.totalorder %s42, 1
      %p107 = por %p105, %p106
      %p108 = scmp.ne.s32.totalorder %s99, %s100
      %p109 = scmp.eq.s32.totalorder %s42, 0
      %p110 = por %p108, %p109
      %p111 = scmp.ne.s32.totalorder %s99, %s100
      %p112 = scmp.eq.s32.totalorder %s43, 1
      %p113 = por %p111, %p112
      %p115 = scmp.ne.s32.totalorder %s100, %s114
      %p116 = scmp.eq.s32.totalorder %s43, 0
      %p117 = por %p115, %p116
      %s119 = sadd.s32 %s118, 1
      %p122 = scmp.eq.s32.totalorder %s37, 1
      %p123 = scmp.ne.s32.totalorder %s118, %s120
      %p124 = scmp.eq.s32.totalorder %s37, 0
      %p125 = por %p123, %p124
      %p126 = scmp.ne.s32.totalorder %s118, %s120
      %p127 = scmp.eq.s32.totalorder %s42, 1
      %p128 = por %p126, %p127
      %p129 = scmp.ne.s32.totalorder %s120, %s121
      %p130 = scmp.eq.s32.totalorder %s42, 0
      %p131 = por %p129, %p130
      %p132 = scmp.ne.s32.totalorder %s120, %s121
      %p133 = scmp.eq.s32.totalorder %s43, 1
      %p134 = por %p132, %p133
      %p136 = scmp.ne.s32.totalorder %s121, %s135
      %p137 = scmp.eq.s32.totalorder %s43, 0
      %p138 = por %p136, %p137
      %s140 = sadd.s32 %s139, 1
      %p143 = scmp.eq.s32.totalorder %s37, 1
      %p144 = scmp.ne.s32.totalorder %s139, %s141
      %p145 = scmp.eq.s32.totalorder %s37, 0
      %p146 = por %p144, %p145
      %p147 = scmp.ne.s32.totalorder %s139, %s141
      %p148 = scmp.eq.s32.totalorder %s42, 1
      %p149 = por %p147, %p148
      %p150 = scmp.ne.s32.totalorder %s141, %s142
      %p151 = scmp.eq.s32.totalorder %s42, 0
      %p152 = por %p150, %p151
      %p153 = scmp.ne.s32.totalorder %s141, %s142
      %p154 = scmp.eq.s32.totalorder %s43, 1
      %p155 = por %p153, %p154
      %p157 = scmp.ne.s32.totalorder %s142, %s156
      %p158 = scmp.eq.s32.totalorder %s43, 0
      %p159 = por %p157, %p158
      %s161 = sadd.s32 %s160, 1
      %p164 = scmp.eq.s32.totalorder %s37, 1
      %p165 = scmp.ne.s32.totalorder %s160, %s162
      %p166 = scmp.eq.s32.totalorder %s37, 0
      %p167 = por %p165, %p166
      %p168 = scmp.ne.s32.totalorder %s160, %s162
      %p169 = scmp.eq.s32.totalorder %s42, 1
      %p170 = por %p168, %p169
      %p171 = scmp.ne.s32.totalorder %s162, %s163
      %p172 = scmp.eq.s32.totalorder %s42, 0
      %p173 = por %p171, %p172
      %p174 = scmp.ne.s32.totalorder %s162, %s163
      %p175 = scmp.eq.s32.totalorder %s43, 1
      %p176 = por %p174, %p175
      %p178 = scmp.ne.s32.totalorder %s163, %s177
      %p179 = scmp.eq.s32.totalorder %s43, 0
      %p180 = por %p178, %p179
      %s182 = sadd.s32 %s181, 1
      %p185 = scmp.eq.s32.totalorder %s37, 1
      %p186 = scmp.ne.s32.totalorder %s181, %s183
      %p187 = scmp.eq.s32.totalorder %s37, 0
      %p188 = por %p186, %p187
      %p189 = scmp.ne.s32.totalorder %s181, %s183
      %p190 = scmp.eq.s32.totalorder %s42, 1
      %p191 = por %p189, %p190
      %p192 = scmp.ne.s32.totalorder %s183, %s184
      %p193 = scmp.eq.s32.totalorder %s42, 0
      %p194 = por %p192, %p193
      %p195 = scmp.ne.s32.totalorder %s183, %s184
      %p196 = scmp.eq.s32.totalorder %s43, 1
      %p197 = por %p195, %p196
      %p199 = scmp.ne.s32.totalorder %s184, %s198
      %p200 = scmp.eq.s32.totalorder %s43, 0
      %p201 = por %p199, %p200
      %s203 = sadd.s32 %s202, 1
      %p206 = scmp.eq.s32.totalorder %s37, 1
      %p207 = scmp.ne.s32.totalorder %s202, %s204
      %p208 = scmp.eq.s32.totalorder %s37, 0
      %p209 = por %p207, %p208
      %p210 = scmp.ne.s32.totalorder %s202, %s204
      %p211 = scmp.eq.s32.totalorder %s42, 1
      %p212 = por %p210, %p211
      %p213 = scmp.ne.s32.totalorder %s204, %s205
      %p214 = scmp.eq.s32.totalorder %s42, 0
      %p215 = por %p213, %p214
      %p216 = scmp.ne.s32.totalorder %s204, %s205
      %p217 = scmp.eq.s32.totalorder %s43, 1
      %p218 = por %p216, %p217
      %p220 = scmp.ne.s32.totalorder %s205, %s219
      %p221 = scmp.eq.s32.totalorder %s43, 0
      %p222 = por %p220, %p221
      %s224 = sadd.s32 %s223, 1
      %p227 = scmp.eq.s32.totalorder %s37, 1
      %p228 = scmp.ne.s32.totalorder %s223, %s225
      %p229 = scmp.eq.s32.totalorder %s37, 0
      %p230 = por %p228, %p229
      %p231 = scmp.ne.s32.totalorder %s223, %s225
      %p232 = scmp.eq.s32.totalorder %s42, 1
      %p233 = por %p231, %p232
      %p234 = scmp.ne.s32.totalorder %s225, %s226
      %p235 = scmp.eq.s32.totalorder %s42, 0
      %p236 = por %p234, %p235
      %p237 = scmp.ne.s32.totalorder %s225, %s226
      %p238 = scmp.eq.s32.totalorder %s43, 1
      %p239 = por %p237, %p238
      %p241 = scmp.ne.s32.totalorder %s226, %s240
      %p242 = scmp.eq.s32.totalorder %s43, 0
      %p243 = por %p241, %p242
      %s245 = sadd.s32 %s244, 1
      %p248 = scmp.eq.s32.totalorder %s37, 1
      %p249 = scmp.ne.s32.totalorder %s244, %s246
      %p250 = scmp.eq.s32.totalorder %s37, 0
      %p251 = por %p249, %p250
      %p252 = scmp.ne.s32.totalorder %s244, %s246
      %p253 = scmp.eq.s32.totalorder %s42, 1
      %p254 = por %p252, %p253
      %p255 = scmp.ne.s32.totalorder %s246, %s247
      %p256 = scmp.eq.s32.totalorder %s42, 0
      %p257 = por %p255, %p256
      %p258 = scmp.ne.s32.totalorder %s246, %s247
      %p259 = scmp.eq.s32.totalorder %s43, 1
      %p260 = por %p258, %p259
      %p262 = scmp.ne.s32.totalorder %s247, %s261
      %p263 = scmp.eq.s32.totalorder %s43, 0
      %p264 = por %p262, %p263
      %s266 = sadd.s32 %s265, 1
      %p269 = scmp.eq.s32.totalorder %s37, 1
      %p270 = scmp.ne.s32.totalorder %s265, %s267
      %p271 = scmp.eq.s32.totalorder %s37, 0
      %p272 = por %p270, %p271
      %p273 = scmp.ne.s32.totalorder %s265, %s267
      %p274 = scmp.eq.s32.totalorder %s42, 1
      %p275 = por %p273, %p274
      %p276 = scmp.ne.s32.totalorder %s267, %s268
      %p277 = scmp.eq.s32.totalorder %s42, 0
      %p278 = por %p276, %p277
      %p279 = scmp.ne.s32.totalorder %s267, %s268
      %p280 = scmp.eq.s32.totalorder %s43, 1
      %p281 = por %p279, %p280
      %p283 = scmp.ne.s32.totalorder %s268, %s282
      %p284 = scmp.eq.s32.totalorder %s43, 0
      %p285 = por %p283, %p284
      %s287 = sadd.s32 %s286, 1
      %p290 = scmp.eq.s32.totalorder %s37, 1
      %p291 = scmp.ne.s32.totalorder %s286, %s288
      %p292 = scmp.eq.s32.totalorder %s37, 0
      %p293 = por %p291, %p292
      %p294 = scmp.ne.s32.totalorder %s286, %s288
      %p295 = scmp.eq.s32.totalorder %s42, 1
      %p296 = por %p294, %p295
      %p297 = scmp.ne.s32.totalorder %s288, %s289
      %p298 = scmp.eq.s32.totalorder %s42, 0
      %p299 = por %p297, %p298
      %p300 = scmp.ne.s32.totalorder %s288, %s289
      %p301 = scmp.eq.s32.totalorder %s43, 1
      %p302 = por %p300, %p301
      %p304 = scmp.ne.s32.totalorder %s289, %s303
      %p305 = scmp.eq.s32.totalorder %s43, 0
      %p306 = por %p304, %p305
      %s308 = sadd.s32 %s307, 1
      %p311 = scmp.eq.s32.totalorder %s37, 1
      %p312 = scmp.ne.s32.totalorder %s307, %s309
      %p313 = scmp.eq.s32.totalorder %s37, 0
      %p314 = por %p312, %p313
      %p315 = scmp.ne.s32.totalorder %s307, %s309
      %p316 = scmp.eq.s32.totalorder %s42, 1
      %p317 = por %p315, %p316
      %p318 = scmp.ne.s32.totalorder %s309, %s310
      %p319 = scmp.eq.s32.totalorder %s42, 0
      %p320 = por %p318, %p319
      %p321 = scmp.ne.s32.totalorder %s309, %s310
      %p322 = scmp.eq.s32.totalorder %s43, 1
      %p323 = por %p321, %p322
      %p325 = scmp.ne.s32.totalorder %s310, %s324
      %p326 = scmp.eq.s32.totalorder %s43, 0
      %p327 = por %p325, %p326
      %s329 = sadd.s32 %s328, 1
      %p332 = scmp.eq.s32.totalorder %s37, 1
      %p333 = scmp.ne.s32.totalorder %s328, %s330
      %p334 = scmp.eq.s32.totalorder %s37, 0
      %p335 = por %p333, %p334
      %p336 = scmp.ne.s32.totalorder %s328, %s330
      %p337 = scmp.eq.s32.totalorder %s42, 1
      %p338 = por %p336, %p337
      %p339 = scmp.ne.s32.totalorder %s330, %s331
      %p340 = scmp.eq.s32.totalorder %s42, 0
      %p341 = por %p339, %p340
      %p342 = scmp.ne.s32.totalorder %s330, %s331
      %p343 = scmp.eq.s32.totalorder %s43, 1
      %p344 = por %p342, %p343
      %p346 = scmp.ne.s32.totalorder %s331, %s345
      %p347 = scmp.eq.s32.totalorder %s43, 0
      %p348 = por %p346, %p347
      %s349 = ssub.s32 %s37, %s44
      %p350 = scmp.eq.s32.totalorder %s349, 0
      %s352 = sadd.s32 %s351, 1
      %s353 = scalar_select %p350, %s351, %s352
      %p356 = pneg %p350
      %p357 = scmp.eq.s32.totalorder %s37, 1
      %p358 = por %p356, %p357
      %p359 = scmp.ne.s32.totalorder %s351, %s354
      %p360 = scmp.eq.s32.totalorder %s37, 0
      %p361 = por %p359, %p360
      %p362 = scmp.ne.s32.totalorder %s351, %s354
      %p363 = scmp.eq.s32.totalorder %s42, 1
      %p364 = por %p362, %p363
      %p365 = scmp.ne.s32.totalorder %s354, %s355
      %p366 = scmp.eq.s32.totalorder %s42, 0
      %p367 = por %p365, %p366
      %p368 = scmp.ne.s32.totalorder %s354, %s355
      %p369 = scmp.eq.s32.totalorder %s43, 1
      %p370 = por %p368, %p369
      %p372 = scmp.ne.s32.totalorder %s355, %s371
      %p373 = scmp.eq.s32.totalorder %s43, 0
      %p374 = por %p372, %p373
      %s375 = ssub.s32 %s37, %s44
      %p376 = scmp.eq.s32.totalorder %s375, 0
      %s378 = sadd.s32 %s377, 1
      %s379 = scalar_select %p376, %s377, %s378
      %p382 = pneg %p376
      %p383 = scmp.eq.s32.totalorder %s37, 1
      %p384 = por %p382, %p383
      %p385 = scmp.ne.s32.totalorder %s377, %s380
      %p386 = scmp.eq.s32.totalorder %s37, 0
      %p387 = por %p385, %p386
      %p388 = scmp.ne.s32.totalorder %s377, %s380
      %p389 = scmp.eq.s32.totalorder %s42, 1
      %p390 = por %p388, %p389
      %p391 = scmp.ne.s32.totalorder %s380, %s381
      %p392 = scmp.eq.s32.totalorder %s42, 0
      %p393 = por %p391, %p392
      %p394 = scmp.ne.s32.totalorder %s380, %s381
      %p395 = scmp.eq.s32.totalorder %s43, 1
      %p396 = por %p394, %p395
      %p398 = scmp.ne.s32.totalorder %s381, %s397
      %p399 = scmp.eq.s32.totalorder %s43, 0
      %p400 = por %p398, %p399
      %p401 = scmp.le.s32.totalorder 1, %s37
      %p402 = scmp.lt.s32.totalorder %s37, 3
      %p403 = pnand %p401, %p402
      %p404 = pneg %p403
      // Predicated region
      $region9: #{tpu_custom_call.1} parent=5 // pred_check
        _
      $region10: #{tpu_custom_call.1} parent=5 // pred_check_branch
        %406 = sbr.rel (%p403) target = $region12
      $region11: #{tpu_custom_call.1} parent=5 // pred_region
        %s407 = ssub.s32 %s37, 1
        // Predicated region
        $region13: #{tpu_custom_call.1} parent=11 // pred_check
          %p408 = pneg %p110
        $region14: #{tpu_custom_call.1} parent=11 // pred_check_branch
          %410 = sbr.rel (%p408) target = $region16
        $region15: #{tpu_custom_call.1} parent=11 // pred_region
          %s412 = ssub.s32 2048, 2048
          %413 = vsyncadd [#allocation6], %s412
          %s414 = sshll.u32 [#allocation7], 4
          %s415 = int_to_ptr.vmem [resolvable:$true] %s414
          %420 = dma.hbm_to_vmem [thread:$0]  %s2, 2048, %s415, [#allocation6], 64, 64, 4
        $region16: #{tpu_custom_call.1} parent=11 // pred_fallthru
          _
        // Predicated region
        $region17: #{tpu_custom_call.1} parent=11 // pred_check
          %p421 = pneg %p131
        $region18: #{tpu_custom_call.1} parent=11 // pred_check_branch
          %423 = sbr.rel (%p421) target = $region20
        $region19: #{tpu_custom_call.1} parent=11 // pred_region
          _
        $region20: #{tpu_custom_call.1} parent=11 // pred_fallthru
          _
        // Predicated region
        $region21: #{tpu_custom_call.1} parent=11 // pred_check
          %p424 = pneg %p152
        $region22: #{tpu_custom_call.1} parent=11 // pred_check_branch
          %426 = sbr.rel (%p424) target = $region24
        $region23: #{tpu_custom_call.1} parent=11 // pred_region
          %s428 = ssub.s32 1024, 1024
          %429 = vsyncadd [#allocation9], %s428
          %s430 = sshll.u32 [#allocation8], 4
          %s431 = int_to_ptr.vmem [resolvable:$true] %s430
          %436 = dma.hbm_to_vmem [thread:$0]  %s4, 1024, %s431, [#allocation9], 64, 64, 4
        $region24: #{tpu_custom_call.1} parent=11 // pred_fallthru
          _
        // Predicated region
        $region25: #{tpu_custom_call.1} parent=11 // pred_check
          %p437 = pneg %p173
        $region26: #{tpu_custom_call.1} parent=11 // pred_check_branch
          %439 = sbr.rel (%p437) target = $region28
        $region27: #{tpu_custom_call.1} parent=11 // pred_region
          _
        $region28: #{tpu_custom_call.1} parent=11 // pred_fallthru
          _
        // Predicated region
        $region29: #{tpu_custom_call.1} parent=11 // pred_check
          %p440 = pneg %p194
        $region30: #{tpu_custom_call.1} parent=11 // pred_check_branch
          %442 = sbr.rel (%p440) target = $region32
        $region31: #{tpu_custom_call.1} parent=11 // pred_region
          %s444 = ssub.s32 2048, 2048
          %445 = vsyncadd [#allocation9], %s444
          %s446 = sshll.u32 [#allocation10], 4
          %s447 = int_to_ptr.vmem [resolvable:$true] %s446
          %452 = dma.hbm_to_vmem [thread:$0]  %s6, 2048, %s447, [#allocation9], 128, 128, 8
        $region32: #{tpu_custom_call.1} parent=11 // pred_fallthru
          _
        // Predicated region
        $region33: #{tpu_custom_call.1} parent=11 // pred_check
          %p453 = pneg %p215
        $region34: #{tpu_custom_call.1} parent=11 // pred_check_branch
          %455 = sbr.rel (%p453) target = $region36
        $region35: #{tpu_custom_call.1} parent=11 // pred_region
          _
        $region36: #{tpu_custom_call.1} parent=11 // pred_fallthru
          _
        // Predicated region
        $region37: #{tpu_custom_call.1} parent=11 // pred_check
          %p456 = pneg %p236
        $region38: #{tpu_custom_call.1} parent=11 // pred_check_branch
          %458 = sbr.rel (%p456) target = $region40
        $region39: #{tpu_custom_call.1} parent=11 // pred_region
          %s460 = ssub.s32 1024, 1024
          %461 = vsyncadd [#allocation12], %s460
          %s462 = sshll.u32 [#allocation11], 4
          %s463 = int_to_ptr.vmem [resolvable:$true] %s462
          %468 = dma.hbm_to_vmem [thread:$0]  %s8, 1024, %s463, [#allocation12], 64, 64, 4
        $region40: #{tpu_custom_call.1} parent=11 // pred_fallthru
          _
        // Predicated region
        $region41: #{tpu_custom_call.1} parent=11 // pred_check
          %p469 = pneg %p257
        $region42: #{tpu_custom_call.1} parent=11 // pred_check_branch
          %471 = sbr.rel (%p469) target = $region44
        $region43: #{tpu_custom_call.1} parent=11 // pred_region
          _
        $region44: #{tpu_custom_call.1} parent=11 // pred_fallthru
          _
        // Predicated region
        $region45: #{tpu_custom_call.1} parent=11 // pred_check
          %p472 = pneg %p278
        $region46: #{tpu_custom_call.1} parent=11 // pred_check_branch
          %474 = sbr.rel (%p472) target = $region48
        $region47: #{tpu_custom_call.1} parent=11 // pred_region
          %s476 = ssub.s32 1024, 1024
          %477 = vsyncadd [#allocation12], %s476
          %s478 = sshll.u32 [#allocation13], 4
          %s479 = int_to_ptr.vmem [resolvable:$true] %s478
          %484 = dma.hbm_to_vmem [thread:$0]  %s10, 1024, %s479, [#allocation12], 64, 64, 4
        $region48: #{tpu_custom_call.1} parent=11 // pred_fallthru
          _
        // Predicated region
        $region49: #{tpu_custom_call.1} parent=11 // pred_check
          %p485 = pneg %p299
        $region50: #{tpu_custom_call.1} parent=11 // pred_check_branch
          %487 = sbr.rel (%p485) target = $region52
        $region51: #{tpu_custom_call.1} parent=11 // pred_region
          _
        $region52: #{tpu_custom_call.1} parent=11 // pred_fallthru
          _
        // Predicated region
        $region53: #{tpu_custom_call.1} parent=11 // pred_check
          %p488 = pneg %p320
        $region54: #{tpu_custom_call.1} parent=11 // pred_check_branch
          %490 = sbr.rel (%p488) target = $region56
        $region55: #{tpu_custom_call.1} parent=11 // pred_region
          %s492 = ssub.s32 2048, 2048
          %493 = vsyncadd [#allocation15], %s492
          %s494 = sshll.u32 [#allocation14], 4
          %s495 = int_to_ptr.vmem [resolvable:$true] %s494
          %500 = dma.hbm_to_vmem [thread:$0]  %s12, 2048, %s495, [#allocation15], 128, 128, 8
        $region56: #{tpu_custom_call.1} parent=11 // pred_fallthru
          _
        // Predicated region
        $region57: #{tpu_custom_call.1} parent=11 // pred_check
          %p501 = pneg %p341
        $region58: #{tpu_custom_call.1} parent=11 // pred_check_branch
          %503 = sbr.rel (%p501) target = $region60
        $region59: #{tpu_custom_call.1} parent=11 // pred_region
          _
        $region60: #{tpu_custom_call.1} parent=11 // pred_fallthru
          _
      $region12: #{tpu_custom_call.1} parent=5 // pred_fallthru
        _
      %p504 = scmp.lt.s32.totalorder %s37, 2
      // Predicated region
      $region61: #{tpu_custom_call.1} parent=5 // pred_check
        %p505 = pneg %p504
      $region62: #{tpu_custom_call.1} parent=5 // pred_check_branch
        %507 = sbr.rel (%p505) target = $region64
      $region63: #{tpu_custom_call.1} parent=5 // pred_region
        // Predicated region
        $region65: #{tpu_custom_call.1} parent=63 // pred_check
          %p508 = pneg %p57
        $region66: #{tpu_custom_call.1} parent=63 // pred_check_branch
          %510 = sbr.rel (%p508) target = $region68
        $region67: #{tpu_custom_call.1} parent=63 // pred_region
          %s511 = sand.u32 %s47, 1
          %s512 = scalar_lea.sflag [#allocation3], %s511
          %s513 = sand.u32 %s47, 1
          %s514 = smul.addr %s513, 256
          %s515 = scalar_lea.vmem [#allocation2], %s514
          %s516 = smul.u32 16, %s37
          %s518 = ssub.s32 4096, 4096
          %519 = vsyncadd %s512, %s518
          %s520 = smul.addr %s516, 2
          %s521 = smul.addr %s520, 128
          %s522 = scalar_lea.hbm %s0, %s521
          %s523 = sshll.u32 %s515, 4
          %s524 = int_to_ptr.vmem [resolvable:$true] %s523
          %529 = dma.hbm_to_vmem [thread:$0]  %s522, 4096, %s524, %s512, 256, 256, 16
        $region68: #{tpu_custom_call.1} parent=63 // pred_fallthru
          _
        // Predicated region
        $region69: #{tpu_custom_call.1} parent=63 // pred_check
          %p530 = pneg %p83
        $region70: #{tpu_custom_call.1} parent=63 // pred_check_branch
          %532 = sbr.rel (%p530) target = $region72
        $region71: #{tpu_custom_call.1} parent=63 // pred_region
          %s533 = sand.u32 %s37, 1
          %s534 = scalar_lea.sflag [#allocation6], %s533
          %s535 = sand.u32 %s73, 1
          %s536 = smul.addr %s535, 128
          %s537 = scalar_lea.vmem [#allocation5], %s536
          %s538 = smul.u32 16, %s37
          %s540 = ssub.s32 2048, 2048
          %541 = vsyncadd %s534, %s540
          %s542 = smul.addr %s538, 128
          %s543 = scalar_lea.hbm %s1, %s542
          %s544 = sshll.u32 %s537, 4
          %s545 = int_to_ptr.vmem [resolvable:$true] %s544
          %550 = dma.hbm_to_vmem [thread:$0]  %s543, 2048, %s545, %s534, 128, 128, 8
        $region72: #{tpu_custom_call.1} parent=63 // pred_fallthru
          _
      $region64: #{tpu_custom_call.1} parent=5 // pred_fallthru
        _
      %p551 = scmp.le.s32.totalorder 1, %s37
      %p552 = scmp.lt.s32.totalorder %s37, 3
      %p553 = pnand %p551, %p552
      %p554 = pneg %p553
      // Predicated region
      $region73: #{tpu_custom_call.1} parent=5 // pred_check
        _
      $region74: #{tpu_custom_call.1} parent=5 // pred_check_branch
        %556 = sbr.rel (%p553) target = $region76
      $region75: #{tpu_custom_call.1} parent=5 // pred_region
        %s557 = ssub.s32 %s37, 1
        %s558 = sand.u32 %s50, 1
        %s559 = scalar_lea.sflag [#allocation3], %s558
        %s560 = sand.u32 %s50, 1
        %s561 = smul.addr %s560, 256
        %s562 = scalar_lea.vmem [#allocation2], %s561
        // Predicated region
        $region77: #{tpu_custom_call.1} parent=75 // pred_check
          %p563 = pneg %p63
        $region78: #{tpu_custom_call.1} parent=75 // pred_check_branch
          %565 = sbr.rel (%p563) target = $region80
        $region79: #{tpu_custom_call.1} parent=75 // pred_region
          %566 = dma.done %s559, 4096
        $region80: #{tpu_custom_call.1} parent=75 // pred_fallthru
          _
        %s567 = sand.u32 %s42, 1
        %s568 = scalar_lea.sflag [#allocation6], %s567
        %s569 = sand.u32 %s76, 1
        %s570 = smul.addr %s569, 128
        %s571 = scalar_lea.vmem [#allocation5], %s570
        // Predicated region
        $region81: #{tpu_custom_call.1} parent=75 // pred_check
          %p572 = pneg %p89
        $region82: #{tpu_custom_call.1} parent=75 // pred_check_branch
          %574 = sbr.rel (%p572) target = $region84
        $region83: #{tpu_custom_call.1} parent=75 // pred_region
          %575 = dma.done %s568, 2048
        $region84: #{tpu_custom_call.1} parent=75 // pred_fallthru
          _
        // Predicated region
        $region85: #{tpu_custom_call.1} parent=75 // pred_check
          %p576 = pneg %p110
        $region86: #{tpu_custom_call.1} parent=75 // pred_check_branch
          %578 = sbr.rel (%p576) target = $region88
        $region87: #{tpu_custom_call.1} parent=75 // pred_region
          %579 = dma.done [#allocation6], 2048
        $region88: #{tpu_custom_call.1} parent=75 // pred_fallthru
          _
        // Predicated region
        $region89: #{tpu_custom_call.1} parent=75 // pred_check
          %p580 = pneg %p152
        $region90: #{tpu_custom_call.1} parent=75 // pred_check_branch
          %582 = sbr.rel (%p580) target = $region92
        $region91: #{tpu_custom_call.1} parent=75 // pred_region
          %583 = dma.done [#allocation9], 1024
        $region92: #{tpu_custom_call.1} parent=75 // pred_fallthru
          _
        // Predicated region
        $region93: #{tpu_custom_call.1} parent=75 // pred_check
          %p584 = pneg %p194
        $region94: #{tpu_custom_call.1} parent=75 // pred_check_branch
          %586 = sbr.rel (%p584) target = $region96
        $region95: #{tpu_custom_call.1} parent=75 // pred_region
          %587 = dma.done [#allocation9], 2048
        $region96: #{tpu_custom_call.1} parent=75 // pred_fallthru
          _
        // Predicated region
        $region97: #{tpu_custom_call.1} parent=75 // pred_check
          %p588 = pneg %p236
        $region98: #{tpu_custom_call.1} parent=75 // pred_check_branch
          %590 = sbr.rel (%p588) target = $region100
        $region99: #{tpu_custom_call.1} parent=75 // pred_region
          %591 = dma.done [#allocation12], 1024
        $region100: #{tpu_custom_call.1} parent=75 // pred_fallthru
          _
        // Predicated region
        $region101: #{tpu_custom_call.1} parent=75 // pred_check
          %p592 = pneg %p278
        $region102: #{tpu_custom_call.1} parent=75 // pred_check_branch
          %594 = sbr.rel (%p592) target = $region104
        $region103: #{tpu_custom_call.1} parent=75 // pred_region
          %595 = dma.done [#allocation12], 1024
        $region104: #{tpu_custom_call.1} parent=75 // pred_fallthru
          _
        // Predicated region
        $region105: #{tpu_custom_call.1} parent=75 // pred_check
          %p596 = pneg %p320
        $region106: #{tpu_custom_call.1} parent=75 // pred_check_branch
          %598 = sbr.rel (%p596) target = $region108
        $region107: #{tpu_custom_call.1} parent=75 // pred_region
          %599 = dma.done [#allocation15], 2048
        $region108: #{tpu_custom_call.1} parent=75 // pred_fallthru
          _
        %s600 = sand.u32 %s50, 1
        %s601 = scalar_lea.sflag [#allocation3], %s600
        %s602 = sand.u32 %s50, 1
        %s603 = smul.addr %s602, 256
        %s604 = scalar_lea.vmem [#allocation2], %s603
        %p605 = pneg %p63
        %p606 = pneg %p60
        %s607 = sand.u32 %s42, 1
        %s608 = scalar_lea.sflag [#allocation6], %s607
        %s609 = sand.u32 %s76, 1
        %s610 = smul.addr %s609, 128
        %s611 = scalar_lea.vmem [#allocation5], %s610
        %p612 = pneg %p89
        %p613 = pneg %p86
        %p614 = pneg %p110
        %p615 = pneg %p107
        %p616 = pneg %p131
        %p617 = pneg %p128
        %p618 = pneg %p152
        %p619 = pneg %p149
        %p620 = pneg %p173
        %p621 = pneg %p170
        %p622 = pneg %p194
        %p623 = pneg %p191
        %p624 = pneg %p215
        %p625 = pneg %p212
        %p626 = pneg %p236
        %p627 = pneg %p233
        %p628 = pneg %p257
        %p629 = pneg %p254
        %p630 = pneg %p278
        %p631 = pneg %p275
        %p632 = pneg %p299
        %p633 = pneg %p296
        %p634 = pneg %p320
        %p635 = pneg %p317
        %p636 = pneg %p341
        %p637 = pneg %p338
        %p638 = pneg %p367
        %p639 = pneg %p364
        %s640 = sand.u32 %s354, 1
        %s641 = scalar_lea.sflag [#allocation4], %s640
        %s642 = sand.u32 %s354, 1
        %s643 = smul.addr %s642, 256
        %s644 = scalar_lea.vmem [#allocation16], %s643
        %p645 = pneg %p393
        %p646 = pneg %p390
        %s647 = sand.u32 %s380, 1
        %s648 = scalar_lea.sflag [#allocation18], %s647
        %s649 = sand.u32 %s380, 1
        %s650 = smul.addr %s649, 384
        %s651 = scalar_lea.vmem [#allocation17], %s650
        %s652 = smul.u32 16, %s42
        %s653 = smul.u32 16, %s42
        %s654 = smul.u32 16, %s42
        %s655 = smul.u32 16, %s42
        %v657 = vld [vmem:[%s562] sm:$0xff]
        %v658 = vld [vmem:[%s562 + $0x8] sm:$0xff]
        %v659 = vld [vmem:[%s562 + $0x10] sm:$0xff]
        %v660 = vld [vmem:[%s562 + $0x18] sm:$0xff]
        %v661 = vld [vmem:[%s562 + $0x20] sm:$0xff]
        %v662 = vld [vmem:[%s562 + $0x28] sm:$0xff]
        %v663 = vld [vmem:[%s562 + $0x30] sm:$0xff]
        %v664 = vld [vmem:[%s562 + $0x38] sm:$0xff]
        %v665 = vld [vmem:[%s562 + $0x40] sm:$0xff]
        %v666 = vld [vmem:[%s562 + $0x48] sm:$0xff]
        %v667 = vld [vmem:[%s562 + $0x50] sm:$0xff]
        %v668 = vld [vmem:[%s562 + $0x58] sm:$0xff]
        %v669 = vld [vmem:[%s562 + $0x60] sm:$0xff]
        %v670 = vld [vmem:[%s562 + $0x68] sm:$0xff]
        %v671 = vld [vmem:[%s562 + $0x70] sm:$0xff]
        %v672 = vld [vmem:[%s562 + $0x78] sm:$0xff]
        %v673 = vld [vmem:[%s562 + $0x80] sm:$0xff]
        %v674 = vld [vmem:[%s562 + $0x88] sm:$0xff]
        %v675 = vld [vmem:[%s562 + $0x90] sm:$0xff]
        %v676 = vld [vmem:[%s562 + $0x98] sm:$0xff]
        %v677 = vld [vmem:[%s562 + $0xa0] sm:$0xff]
        %v678 = vld [vmem:[%s562 + $0xa8] sm:$0xff]
        %v679 = vld [vmem:[%s562 + $0xb0] sm:$0xff]
        %v680 = vld [vmem:[%s562 + $0xb8] sm:$0xff]
        %v681 = vld [vmem:[%s562 + $0xc0] sm:$0xff]
        %v682 = vld [vmem:[%s562 + $0xc8] sm:$0xff]
        %v683 = vld [vmem:[%s562 + $0xd0] sm:$0xff]
        %v684 = vld [vmem:[%s562 + $0xd8] sm:$0xff]
        %v685 = vld [vmem:[%s562 + $0xe0] sm:$0xff]
        %v686 = vld [vmem:[%s562 + $0xe8] sm:$0xff]
        %v687 = vld [vmem:[%s562 + $0xf0] sm:$0xff]
        %v688 = vld [vmem:[%s562 + $0xf8] sm:$0xff]
        %v689 = vpack.c.bf16 %v659, %v657
        %v690 = vpack.c.bf16 %v660, %v658
        %v691 = vpack.c.bf16 %v663, %v661
        %v692 = vpack.c.bf16 %v664, %v662
        %v693 = vpack.c.bf16 %v667, %v665
        %v694 = vpack.c.bf16 %v668, %v666
        %v695 = vpack.c.bf16 %v671, %v669
        %v696 = vpack.c.bf16 %v672, %v670
        %v697 = vpack.c.bf16 %v675, %v673
        %v698 = vpack.c.bf16 %v676, %v674
        %v699 = vpack.c.bf16 %v679, %v677
        %v700 = vpack.c.bf16 %v680, %v678
        %v701 = vpack.c.bf16 %v683, %v681
        %v702 = vpack.c.bf16 %v684, %v682
        %v703 = vpack.c.bf16 %v687, %v685
        %v704 = vpack.c.bf16 %v688, %v686
        %v705 = vld [vmem:[#allocation7] sm:$0xf]
        %v706 = vld [vmem:[#allocation7 + $0x4] sm:$0xf]
        %v707 = vld [vmem:[#allocation7 + $0x8] sm:$0xf]
        %v708 = vld [vmem:[#allocation7 + $0xc] sm:$0xf]
        %v709 = vld [vmem:[#allocation7 + $0x10] sm:$0xf]
        %v710 = vld [vmem:[#allocation7 + $0x14] sm:$0xf]
        %v711 = vld [vmem:[#allocation7 + $0x18] sm:$0xf]
        %v712 = vld [vmem:[#allocation7 + $0x1c] sm:$0xf]
        %v713 = vld [vmem:[#allocation7 + $0x20] sm:$0xf]
        %v714 = vld [vmem:[#allocation7 + $0x24] sm:$0xf]
        %v715 = vld [vmem:[#allocation7 + $0x28] sm:$0xf]
        %v716 = vld [vmem:[#allocation7 + $0x2c] sm:$0xf]
        %v717 = vld [vmem:[#allocation7 + $0x30] sm:$0xf]
        %v718 = vld [vmem:[#allocation7 + $0x34] sm:$0xf]
        %v719 = vld [vmem:[#allocation7 + $0x38] sm:$0xf]
        %v720 = vld [vmem:[#allocation7 + $0x3c] sm:$0xf]
        %v721 = vld [vmem:[#allocation7 + $0x40] sm:$0xf]
        %v722 = vld [vmem:[#allocation7 + $0x44] sm:$0xf]
        %v723 = vld [vmem:[#allocation7 + $0x48] sm:$0xf]
        %v724 = vld [vmem:[#allocation7 + $0x4c] sm:$0xf]
        %v725 = vld [vmem:[#allocation7 + $0x50] sm:$0xf]
        %v726 = vld [vmem:[#allocation7 + $0x54] sm:$0xf]
        %v727 = vld [vmem:[#allocation7 + $0x58] sm:$0xf]
        %v728 = vld [vmem:[#allocation7 + $0x5c] sm:$0xf]
        %v729 = vld [vmem:[#allocation7 + $0x60] sm:$0xf]
        %v730 = vld [vmem:[#allocation7 + $0x64] sm:$0xf]
        %v731 = vld [vmem:[#allocation7 + $0x68] sm:$0xf]
        %v732 = vld [vmem:[#allocation7 + $0x6c] sm:$0xf]
        %v733 = vld [vmem:[#allocation7 + $0x70] sm:$0xf]
        %v734 = vld [vmem:[#allocation7 + $0x74] sm:$0xf]
        %v735 = vld [vmem:[#allocation7 + $0x78] sm:$0xf]
        %v736 = vld [vmem:[#allocation7 + $0x7c] sm:$0xf]
        %v737 = vld [vmem:[%s3] sm:$0x1]
        %v739 = vlaneseq
        %v740 = vshrl.u32 %v739, 7
        %v741 = vsub.s32 0, %v740
        %v742 = vrot.slane %v737, %v741
        %v776 = vunpack.c.l.b16 %v705
        %v777 = vunpack.c.l.b16 %v706
        %v778 = vunpack.c.l.b16 %v707
        %v779 = vunpack.c.l.b16 %v708
        %v780 = vunpack.c.l.b16 %v709
        %v781 = vunpack.c.l.b16 %v710
        %v782 = vunpack.c.l.b16 %v711
        %v783 = vunpack.c.l.b16 %v712
        %v784 = vunpack.c.l.b16 %v713
        %v785 = vunpack.c.l.b16 %v714
        %v786 = vunpack.c.l.b16 %v715
        %v787 = vunpack.c.l.b16 %v716
        %v788 = vunpack.c.l.b16 %v717
        %v789 = vunpack.c.l.b16 %v718
        %v790 = vunpack.c.l.b16 %v719
        %v791 = vunpack.c.l.b16 %v720
        %v792 = vunpack.c.l.b16 %v721
        %v793 = vunpack.c.l.b16 %v722
        %v794 = vunpack.c.l.b16 %v723
        %v795 = vunpack.c.l.b16 %v724
        %v796 = vunpack.c.l.b16 %v725
        %v797 = vunpack.c.l.b16 %v726
        %v798 = vunpack.c.l.b16 %v727
        %v799 = vunpack.c.l.b16 %v728
        %v800 = vunpack.c.l.b16 %v729
        %v801 = vunpack.c.l.b16 %v730
        %v802 = vunpack.c.l.b16 %v731
        %v803 = vunpack.c.l.b16 %v732
        %v804 = vunpack.c.l.b16 %v733
        %v805 = vunpack.c.l.b16 %v734
        %v806 = vunpack.c.l.b16 %v735
        %v807 = vunpack.c.l.b16 %v736
        %v808 = vpack.c.b16 %v777, %v776
        %v809 = vpack.c.b16 %v779, %v778
        %v810 = vpack.c.b16 %v781, %v780
        %v811 = vpack.c.b16 %v783, %v782
        %v812 = vpack.c.b16 %v785, %v784
        %v813 = vpack.c.b16 %v787, %v786
        %v814 = vpack.c.b16 %v789, %v788
        %v815 = vpack.c.b16 %v791, %v790
        %v816 = vpack.c.b16 %v793, %v792
        %v817 = vpack.c.b16 %v795, %v794
        %v818 = vpack.c.b16 %v797, %v796
        %v819 = vpack.c.b16 %v799, %v798
        %v820 = vpack.c.b16 %v801, %v800
        %v821 = vpack.c.b16 %v803, %v802
        %v822 = vpack.c.b16 %v805, %v804
        %v823 = vpack.c.b16 %v807, %v806
        %840 = vmatprep.subr.bf16.mxu0 0
        %841 = vmatpush1.bf16.msra.mxu0 %v815
        %842 = vmatprep.subr.bf16.mxu0 0
        %843 = vmatpush1.bf16.msra.mxu0 %v814
        %844 = vmatprep.subr.bf16.mxu0 0
        %845 = vmatpush1.bf16.msra.mxu0 %v813
        %846 = vmatprep.subr.bf16.mxu0 0
        %847 = vmatpush1.bf16.msra.mxu0 %v812
        %848 = vmatprep.subr.bf16.mxu0 0
        %849 = vmatpush1.bf16.msra.mxu0 %v811
        %850 = vmatprep.subr.bf16.mxu0 0
        %851 = vmatpush1.bf16.msra.mxu0 %v810
        %852 = vmatprep.subr.bf16.mxu0 0
        %853 = vmatpush1.bf16.msra.mxu0 %v809
        %854 = vmatprep.subr.bf16.mxu0 0
        %855 = vmatpush1.bf16.msra.mxu0 %v808
        %856 = vmatprep.subr.bf16.mxu0 0
        %857 = vmatpush2.bf16.msra.mxu0 %v823
        %858 = vmatprep.subr.bf16.mxu0 0
        %859 = vmatpush2.bf16.msra.mxu0 %v822
        %860 = vmatprep.subr.bf16.mxu0 0
        %861 = vmatpush2.bf16.msra.mxu0 %v821
        %862 = vmatprep.subr.bf16.mxu0 0
        %863 = vmatpush2.bf16.msra.mxu0 %v820
        %864 = vmatprep.subr.bf16.mxu0 0
        %865 = vmatpush2.bf16.msra.mxu0 %v819
        %866 = vmatprep.subr.bf16.mxu0 0
        %867 = vmatpush2.bf16.msra.mxu0 %v818
        %868 = vmatprep.subr.bf16.mxu0 0
        %869 = vmatpush2.bf16.msra.mxu0 %v817
        %870 = vmatprep.subr.bf16.mxu0 0
        %871 = vmatpush2.bf16.msra.mxu0 %v816
        %872 = vmatprep.mubr.bf16.mxu0 %v690
        %873 = vmatmul.mubr.bf16.gmra.mxu0 %v689
        %v874 = vpop.f32.mrf.mxu0
        %v875 = vadd.f32 %v742, %v874
        %v876 = vpop.f32.mrf.mxu0
        %v877 = vpop.f32.mrf.mxu0
        %v878 = vadd.f32 %v742, %v877
        %v879 = vpop.f32.mrf.mxu0
        %880 = vmatprep.mubr.bf16.mxu0 %v692
        %881 = vmatmul.mubr.bf16.gmra.mxu0 %v691
        %v882 = vpop.f32.mrf.mxu0
        %v883 = vadd.f32 %v742, %v882
        %v884 = vpop.f32.mrf.mxu0
        %v885 = vpop.f32.mrf.mxu0
        %v886 = vadd.f32 %v742, %v885
        %v887 = vpop.f32.mrf.mxu0
        %888 = vmatprep.mubr.bf16.mxu0 %v694
        %889 = vmatmul.mubr.bf16.gmra.mxu0 %v693
        %v890 = vpop.f32.mrf.mxu0
        %v891 = vadd.f32 %v742, %v890
        %v892 = vpop.f32.mrf.mxu0
        %v893 = vpop.f32.mrf.mxu0
        %v894 = vadd.f32 %v742, %v893
        %v895 = vpop.f32.mrf.mxu0
        %896 = vmatprep.mubr.bf16.mxu0 %v696
        %897 = vmatmul.mubr.bf16.gmra.mxu0 %v695
        %v898 = vpop.f32.mrf.mxu0
        %v899 = vadd.f32 %v742, %v898
        %v900 = vpop.f32.mrf.mxu0
        %v901 = vpop.f32.mrf.mxu0
        %v902 = vadd.f32 %v742, %v901
        %v903 = vpop.f32.mrf.mxu0
        %904 = vmatprep.mubr.bf16.mxu0 %v698
        %905 = vmatmul.mubr.bf16.gmra.mxu0 %v697
        %v906 = vpop.f32.mrf.mxu0
        %v907 = vadd.f32 %v742, %v906
        %v908 = vpop.f32.mrf.mxu0
        %v909 = vpop.f32.mrf.mxu0
        %v910 = vadd.f32 %v742, %v909
        %v911 = vpop.f32.mrf.mxu0
        %912 = vmatprep.mubr.bf16.mxu0 %v700
        %913 = vmatmul.mubr.bf16.gmra.mxu0 %v699
        %v914 = vpop.f32.mrf.mxu0
        %v915 = vadd.f32 %v742, %v914
        %v916 = vpop.f32.mrf.mxu0
        %v917 = vpop.f32.mrf.mxu0
        %v918 = vadd.f32 %v742, %v917
        %v919 = vpop.f32.mrf.mxu0
        %920 = vmatprep.mubr.bf16.mxu0 %v702
        %921 = vmatmul.mubr.bf16.gmra.mxu0 %v701
        %v922 = vpop.f32.mrf.mxu0
        %v923 = vadd.f32 %v742, %v922
        %v924 = vpop.f32.mrf.mxu0
        %v925 = vpop.f32.mrf.mxu0
        %v926 = vadd.f32 %v742, %v925
        %v927 = vpop.f32.mrf.mxu0
        %928 = vmatprep.mubr.bf16.mxu0 %v704
        %929 = vmatmul.mubr.bf16.gmra.mxu0 %v703
        %v930 = vpop.f32.mrf.mxu0
        %v931 = vadd.f32 %v742, %v930
        %v932 = vpop.f32.mrf.mxu0
        %v933 = vpop.f32.mrf.mxu0
        %v934 = vadd.f32 %v742, %v933
        %v935 = vpop.f32.mrf.mxu0
        %936 = vdwg.mxu0
        %v937 = vmax.f32 %v875, 0.0
        %v938 = vmax.f32 %v878, 0.0
        %v939 = vmax.f32 %v883, 0.0
        %v940 = vmax.f32 %v886, 0.0
        %v941 = vmax.f32 %v891, 0.0
        %v942 = vmax.f32 %v894, 0.0
        %v943 = vmax.f32 %v899, 0.0
        %v944 = vmax.f32 %v902, 0.0
        %v945 = vmax.f32 %v907, 0.0
        %v946 = vmax.f32 %v910, 0.0
        %v947 = vmax.f32 %v915, 0.0
        %v948 = vmax.f32 %v918, 0.0
        %v949 = vmax.f32 %v923, 0.0
        %v950 = vmax.f32 %v926, 0.0
        %v951 = vmax.f32 %v931, 0.0
        %v952 = vmax.f32 %v934, 0.0
        %v953 = vpack.c.bf16 %v938, %v937
        %v954 = vpack.c.bf16 %v940, %v939
        %v955 = vpack.c.bf16 %v942, %v941
        %v956 = vpack.c.bf16 %v944, %v943
        %v957 = vpack.c.bf16 %v946, %v945
        %v958 = vpack.c.bf16 %v948, %v947
        %v959 = vpack.c.bf16 %v950, %v949
        %v960 = vpack.c.bf16 %v952, %v951
        %v961 = vld [vmem:[#allocation8] sm:$0xf]
        %v962 = vld [vmem:[#allocation8 + $0x4] sm:$0xf]
        %v963 = vld [vmem:[#allocation8 + $0x8] sm:$0xf]
        %v964 = vld [vmem:[#allocation8 + $0xc] sm:$0xf]
        %v965 = vld [vmem:[#allocation8 + $0x10] sm:$0xf]
        %v966 = vld [vmem:[#allocation8 + $0x14] sm:$0xf]
        %v967 = vld [vmem:[#allocation8 + $0x18] sm:$0xf]
        %v968 = vld [vmem:[#allocation8 + $0x1c] sm:$0xf]
        %v969 = vld [vmem:[#allocation8 + $0x20] sm:$0xf]
        %v970 = vld [vmem:[#allocation8 + $0x24] sm:$0xf]
        %v971 = vld [vmem:[#allocation8 + $0x28] sm:$0xf]
        %v972 = vld [vmem:[#allocation8 + $0x2c] sm:$0xf]
        %v973 = vld [vmem:[#allocation8 + $0x30] sm:$0xf]
        %v974 = vld [vmem:[#allocation8 + $0x34] sm:$0xf]
        %v975 = vld [vmem:[#allocation8 + $0x38] sm:$0xf]
        %v976 = vld [vmem:[#allocation8 + $0x3c] sm:$0xf]
        %v977 = vld [vmem:[%s5] sm:$0x1]
        %v979 = vlaneseq
        %v980 = vshrl.u32 %v979, 7
        %v981 = vsub.s32 0, %v980
        %v982 = vrot.slane %v977, %v981
        %v1000 = vunpack.c.l.b16 %v961
        %v1001 = vunpack.c.l.b16 %v962
        %v1002 = vunpack.c.l.b16 %v963
        %v1003 = vunpack.c.l.b16 %v964
        %v1004 = vunpack.c.l.b16 %v965
        %v1005 = vunpack.c.l.b16 %v966
        %v1006 = vunpack.c.l.b16 %v967
        %v1007 = vunpack.c.l.b16 %v968
        %v1008 = vunpack.c.l.b16 %v969
        %v1009 = vunpack.c.l.b16 %v970
        %v1010 = vunpack.c.l.b16 %v971
        %v1011 = vunpack.c.l.b16 %v972
        %v1012 = vunpack.c.l.b16 %v973
        %v1013 = vunpack.c.l.b16 %v974
        %v1014 = vunpack.c.l.b16 %v975
        %v1015 = vunpack.c.l.b16 %v976
        %v1016 = vpack.c.b16 %v1001, %v1000
        %v1017 = vpack.c.b16 %v1003, %v1002
        %v1018 = vpack.c.b16 %v1005, %v1004
        %v1019 = vpack.c.b16 %v1007, %v1006
        %v1020 = vpack.c.b16 %v1009, %v1008
        %v1021 = vpack.c.b16 %v1011, %v1010
        %v1022 = vpack.c.b16 %v1013, %v1012
        %v1023 = vpack.c.b16 %v1015, %v1014
        %1032 = vmatprep.subr.bf16.mxu0 0
        %1033 = vmatpush1.bf16.msra.mxu0 %v1023
        %1034 = vmatprep.subr.bf16.mxu0 0
        %1035 = vmatpush1.bf16.msra.mxu0 %v1022
        %1036 = vmatprep.subr.bf16.mxu0 0
        %1037 = vmatpush1.bf16.msra.mxu0 %v1021
        %1038 = vmatprep.subr.bf16.mxu0 0
        %1039 = vmatpush1.bf16.msra.mxu0 %v1020
        %1040 = vmatprep.subr.bf16.mxu0 0
        %1041 = vmatpush1.bf16.msra.mxu0 %v1019
        %1042 = vmatprep.subr.bf16.mxu0 0
        %1043 = vmatpush1.bf16.msra.mxu0 %v1018
        %1044 = vmatprep.subr.bf16.mxu0 0
        %1045 = vmatpush1.bf16.msra.mxu0 %v1017
        %1046 = vmatprep.subr.bf16.mxu0 0
        %1047 = vmatpush1.bf16.msra.mxu0 %v1016
        %1048 = vmatprep.subr.bf16.mxu0 0
        %1049 = vmatpush2.bf16.msra.mxu0 0
        %1050 = vmatprep.subr.bf16.mxu0 0
        %1051 = vmatpush2.bf16.msra.mxu0 0
        %1052 = vmatprep.subr.bf16.mxu0 0
        %1053 = vmatpush2.bf16.msra.mxu0 0
        %1054 = vmatprep.subr.bf16.mxu0 0
        %1055 = vmatpush2.bf16.msra.mxu0 0
        %1056 = vmatprep.subr.bf16.mxu0 0
        %1057 = vmatpush2.bf16.msra.mxu0 0
        %1058 = vmatprep.subr.bf16.mxu0 0
        %1059 = vmatpush2.bf16.msra.mxu0 0
        %1060 = vmatprep.subr.bf16.mxu0 0
        %1061 = vmatpush2.bf16.msra.mxu0 0
        %1062 = vmatprep.subr.bf16.mxu0 0
        %1063 = vmatpush2.bf16.msra.mxu0 0
        %1064 = vmatprep.mubr.bf16.mxu0 0
        %1065 = vmatmul.mubr.bf16.gmra.mxu0 %v953
        %v1066 = vpop.f32.mrf.mxu0
        %v1067 = vadd.f32 %v982, %v1066
        %v1068 = vpop.f32.mrf.mxu0
        %v1069 = vpop.f32.mrf.mxu0
        %v1070 = vadd.f32 %v982, %v1069
        %v1071 = vpop.f32.mrf.mxu0
        %1072 = vmatprep.mubr.bf16.mxu0 0
        %1073 = vmatmul.mubr.bf16.gmra.mxu0 %v954
        %v1074 = vpop.f32.mrf.mxu0
        %v1075 = vadd.f32 %v982, %v1074
        %v1076 = vpop.f32.mrf.mxu0
        %v1077 = vpop.f32.mrf.mxu0
        %v1078 = vadd.f32 %v982, %v1077
        %v1079 = vpop.f32.mrf.mxu0
        %1080 = vmatprep.mubr.bf16.mxu0 0
        %1081 = vmatmul.mubr.bf16.gmra.mxu0 %v955
        %v1082 = vpop.f32.mrf.mxu0
        %v1083 = vadd.f32 %v982, %v1082
        %v1084 = vpop.f32.mrf.mxu0
        %v1085 = vpop.f32.mrf.mxu0
        %v1086 = vadd.f32 %v982, %v1085
        %v1087 = vpop.f32.mrf.mxu0
        %1088 = vmatprep.mubr.bf16.mxu0 0
        %1089 = vmatmul.mubr.bf16.gmra.mxu0 %v956
        %v1090 = vpop.f32.mrf.mxu0
        %v1091 = vadd.f32 %v982, %v1090
        %v1092 = vpop.f32.mrf.mxu0
        %v1093 = vpop.f32.mrf.mxu0
        %v1094 = vadd.f32 %v982, %v1093
        %v1095 = vpop.f32.mrf.mxu0
        %1096 = vmatprep.mubr.bf16.mxu0 0
        %1097 = vmatmul.mubr.bf16.gmra.mxu0 %v957
        %v1098 = vpop.f32.mrf.mxu0
        %v1099 = vadd.f32 %v982, %v1098
        %v1100 = vpop.f32.mrf.mxu0
        %v1101 = vpop.f32.mrf.mxu0
        %v1102 = vadd.f32 %v982, %v1101
        %v1103 = vpop.f32.mrf.mxu0
        %1104 = vmatprep.mubr.bf16.mxu0 0
        %1105 = vmatmul.mubr.bf16.gmra.mxu0 %v958
        %v1106 = vpop.f32.mrf.mxu0
        %v1107 = vadd.f32 %v982, %v1106
        %v1108 = vpop.f32.mrf.mxu0
        %v1109 = vpop.f32.mrf.mxu0
        %v1110 = vadd.f32 %v982, %v1109
        %v1111 = vpop.f32.mrf.mxu0
        %1112 = vmatprep.mubr.bf16.mxu0 0
        %1113 = vmatmul.mubr.bf16.gmra.mxu0 %v959
        %v1114 = vpop.f32.mrf.mxu0
        %v1115 = vadd.f32 %v982, %v1114
        %v1116 = vpop.f32.mrf.mxu0
        %v1117 = vpop.f32.mrf.mxu0
        %v1118 = vadd.f32 %v982, %v1117
        %v1119 = vpop.f32.mrf.mxu0
        %1120 = vmatprep.mubr.bf16.mxu0 0
        %1121 = vmatmul.mubr.bf16.gmra.mxu0 %v960
        %v1122 = vpop.f32.mrf.mxu0
        %v1123 = vadd.f32 %v982, %v1122
        %v1124 = vpop.f32.mrf.mxu0
        %v1125 = vpop.f32.mrf.mxu0
        %v1126 = vadd.f32 %v982, %v1125
        %v1127 = vpop.f32.mrf.mxu0
        %1128 = vdwg.mxu0
        %v1129 = vmax.f32 %v1067, 0.0
        %v1130 = vmax.f32 %v1070, 0.0
        %v1131 = vmax.f32 %v1075, 0.0
        %v1132 = vmax.f32 %v1078, 0.0
        %v1133 = vmax.f32 %v1083, 0.0
        %v1134 = vmax.f32 %v1086, 0.0
        %v1135 = vmax.f32 %v1091, 0.0
        %v1136 = vmax.f32 %v1094, 0.0
        %v1137 = vmax.f32 %v1099, 0.0
        %v1138 = vmax.f32 %v1102, 0.0
        %v1139 = vmax.f32 %v1107, 0.0
        %v1140 = vmax.f32 %v1110, 0.0
        %v1141 = vmax.f32 %v1115, 0.0
        %v1142 = vmax.f32 %v1118, 0.0
        %v1143 = vmax.f32 %v1123, 0.0
        %v1144 = vmax.f32 %v1126, 0.0
        %v1145 = vpack.c.bf16 %v1130, %v1129
        %v1146 = vpack.c.bf16 %v1132, %v1131
        %v1147 = vpack.c.bf16 %v1134, %v1133
        %v1148 = vpack.c.bf16 %v1136, %v1135
        %v1149 = vpack.c.bf16 %v1138, %v1137
        %v1150 = vpack.c.bf16 %v1140, %v1139
        %v1151 = vpack.c.bf16 %v1142, %v1141
        %v1152 = vpack.c.bf16 %v1144, %v1143
        %v1153 = vld [vmem:[#allocation10] sm:$0xff]
        %v1154 = vld [vmem:[#allocation10 + $0x8] sm:$0xff]
        %v1155 = vld [vmem:[#allocation10 + $0x10] sm:$0xff]
        %v1156 = vld [vmem:[#allocation10 + $0x18] sm:$0xff]
        %v1157 = vld [vmem:[#allocation10 + $0x20] sm:$0xff]
        %v1158 = vld [vmem:[#allocation10 + $0x28] sm:$0xff]
        %v1159 = vld [vmem:[#allocation10 + $0x30] sm:$0xff]
        %v1160 = vld [vmem:[#allocation10 + $0x38] sm:$0xff]
        %v1161 = vld [vmem:[#allocation10 + $0x40] sm:$0xff]
        %v1162 = vld [vmem:[#allocation10 + $0x48] sm:$0xff]
        %v1163 = vld [vmem:[#allocation10 + $0x50] sm:$0xff]
        %v1164 = vld [vmem:[#allocation10 + $0x58] sm:$0xff]
        %v1165 = vld [vmem:[#allocation10 + $0x60] sm:$0xff]
        %v1166 = vld [vmem:[#allocation10 + $0x68] sm:$0xff]
        %v1167 = vld [vmem:[#allocation10 + $0x70] sm:$0xff]
        %v1168 = vld [vmem:[#allocation10 + $0x78] sm:$0xff]
        %v1169 = vld [vmem:[%s7] sm:$0x3]
        %v1171 = vlaneseq
        %v1172 = vshrl.u32 %v1171, 7
        %v1173 = vsub.s32 0, %v1172
        %v1174 = vrot.slane %v1169, %v1173
        %v1175 = vlaneseq
        %v1176 = vshrl.u32 %v1175, 7
        %v1177 = vsub.s32 1, %v1176
        %v1178 = vrot.slane %v1169, %v1177
        %v1197 = vunpack.c.l.b16 %v1153
        %v1198 = vunpack.c.h.b16 %v1153
        %v1199 = vunpack.c.l.b16 %v1154
        %v1200 = vunpack.c.h.b16 %v1154
        %v1201 = vunpack.c.l.b16 %v1155
        %v1202 = vunpack.c.h.b16 %v1155
        %v1203 = vunpack.c.l.b16 %v1156
        %v1204 = vunpack.c.h.b16 %v1156
        %v1205 = vunpack.c.l.b16 %v1157
        %v1206 = vunpack.c.h.b16 %v1157
        %v1207 = vunpack.c.l.b16 %v1158
        %v1208 = vunpack.c.h.b16 %v1158
        %v1209 = vunpack.c.l.b16 %v1159
        %v1210 = vunpack.c.h.b16 %v1159
        %v1211 = vunpack.c.l.b16 %v1160
        %v1212 = vunpack.c.h.b16 %v1160
        %v1213 = vunpack.c.l.b16 %v1161
        %v1214 = vunpack.c.h.b16 %v1161
        %v1215 = vunpack.c.l.b16 %v1162
        %v1216 = vunpack.c.h.b16 %v1162
        %v1217 = vunpack.c.l.b16 %v1163
        %v1218 = vunpack.c.h.b16 %v1163
        %v1219 = vunpack.c.l.b16 %v1164
        %v1220 = vunpack.c.h.b16 %v1164
        %v1221 = vunpack.c.l.b16 %v1165
        %v1222 = vunpack.c.h.b16 %v1165
        %v1223 = vunpack.c.l.b16 %v1166
        %v1224 = vunpack.c.h.b16 %v1166
        %v1225 = vunpack.c.l.b16 %v1167
        %v1226 = vunpack.c.h.b16 %v1167
        %v1227 = vunpack.c.l.b16 %v1168
        %v1228 = vunpack.c.h.b16 %v1168
        %v1229 = vpack.c.b16 %v1199, %v1197
        %v1230 = vpack.c.b16 %v1200, %v1198
        %v1231 = vpack.c.b16 %v1203, %v1201
        %v1232 = vpack.c.b16 %v1204, %v1202
        %v1233 = vpack.c.b16 %v1207, %v1205
        %v1234 = vpack.c.b16 %v1208, %v1206
        %v1235 = vpack.c.b16 %v1211, %v1209
        %v1236 = vpack.c.b16 %v1212, %v1210
        %v1237 = vpack.c.b16 %v1215, %v1213
        %v1238 = vpack.c.b16 %v1216, %v1214
        %v1239 = vpack.c.b16 %v1219, %v1217
        %v1240 = vpack.c.b16 %v1220, %v1218
        %v1241 = vpack.c.b16 %v1223, %v1221
        %v1242 = vpack.c.b16 %v1224, %v1222
        %v1243 = vpack.c.b16 %v1227, %v1225
        %v1244 = vpack.c.b16 %v1228, %v1226
        %1261 = vmatprep.subr.bf16.mxu0 %v1244
        %1262 = vmatpush1.bf16.msra.mxu0 %v1243
        %1263 = vmatprep.subr.bf16.mxu0 %v1242
        %1264 = vmatpush1.bf16.msra.mxu0 %v1241
        %1265 = vmatprep.subr.bf16.mxu0 %v1240
        %1266 = vmatpush1.bf16.msra.mxu0 %v1239
        %1267 = vmatprep.subr.bf16.mxu0 %v1238
        %1268 = vmatpush1.bf16.msra.mxu0 %v1237
        %1269 = vmatprep.subr.bf16.mxu0 %v1236
        %1270 = vmatpush1.bf16.msra.mxu0 %v1235
        %1271 = vmatprep.subr.bf16.mxu0 %v1234
        %1272 = vmatpush1.bf16.msra.mxu0 %v1233
        %1273 = vmatprep.subr.bf16.mxu0 %v1232
        %1274 = vmatpush1.bf16.msra.mxu0 %v1231
        %1275 = vmatprep.subr.bf16.mxu0 %v1230
        %1276 = vmatpush1.bf16.msra.mxu0 %v1229
        %1277 = vmatprep.subr.bf16.mxu0 0
        %1278 = vmatpush2.bf16.msra.mxu0 0
        %1279 = vmatprep.subr.bf16.mxu0 0
        %1280 = vmatpush2.bf16.msra.mxu0 0
        %1281 = vmatprep.subr.bf16.mxu0 0
        %1282 = vmatpush2.bf16.msra.mxu0 0
        %1283 = vmatprep.subr.bf16.mxu0 0
        %1284 = vmatpush2.bf16.msra.mxu0 0
        %1285 = vmatprep.subr.bf16.mxu0 0
        %1286 = vmatpush2.bf16.msra.mxu0 0
        %1287 = vmatprep.subr.bf16.mxu0 0
        %1288 = vmatpush2.bf16.msra.mxu0 0
        %1289 = vmatprep.subr.bf16.mxu0 0
        %1290 = vmatpush2.bf16.msra.mxu0 0
        %1291 = vmatprep.subr.bf16.mxu0 0
        %1292 = vmatpush2.bf16.msra.mxu0 0
        %1293 = vmatprep.mubr.bf16.mxu0 0
        %1294 = vmatmul.mubr.bf16.gmra.mxu0 %v1145
        %v1295 = vpop.f32.mrf.mxu0
        %v1296 = vadd.f32 %v1174, %v1295
        %v1297 = vpop.f32.mrf.mxu0
        %v1298 = vadd.f32 %v1178, %v1297
        %v1299 = vpop.f32.mrf.mxu0
        %v1300 = vadd.f32 %v1174, %v1299
        %v1301 = vpop.f32.mrf.mxu0
        %v1302 = vadd.f32 %v1178, %v1301
        %1303 = vmatprep.mubr.bf16.mxu0 0
        %1304 = vmatmul.mubr.bf16.gmra.mxu0 %v1146
        %v1305 = vpop.f32.mrf.mxu0
        %v1306 = vadd.f32 %v1174, %v1305
        %v1307 = vpop.f32.mrf.mxu0
        %v1308 = vadd.f32 %v1178, %v1307
        %v1309 = vpop.f32.mrf.mxu0
        %v1310 = vadd.f32 %v1174, %v1309
        %v1311 = vpop.f32.mrf.mxu0
        %v1312 = vadd.f32 %v1178, %v1311
        %1313 = vmatprep.mubr.bf16.mxu0 0
        %1314 = vmatmul.mubr.bf16.gmra.mxu0 %v1147
        %v1315 = vpop.f32.mrf.mxu0
        %v1316 = vadd.f32 %v1174, %v1315
        %v1317 = vpop.f32.mrf.mxu0
        %v1318 = vadd.f32 %v1178, %v1317
        %v1319 = vpop.f32.mrf.mxu0
        %v1320 = vadd.f32 %v1174, %v1319
        %v1321 = vpop.f32.mrf.mxu0
        %v1322 = vadd.f32 %v1178, %v1321
        %1323 = vmatprep.mubr.bf16.mxu0 0
        %1324 = vmatmul.mubr.bf16.gmra.mxu0 %v1148
        %v1325 = vpop.f32.mrf.mxu0
        %v1326 = vadd.f32 %v1174, %v1325
        %v1327 = vpop.f32.mrf.mxu0
        %v1328 = vadd.f32 %v1178, %v1327
        %v1329 = vpop.f32.mrf.mxu0
        %v1330 = vadd.f32 %v1174, %v1329
        %v1331 = vpop.f32.mrf.mxu0
        %v1332 = vadd.f32 %v1178, %v1331
        %1333 = vmatprep.mubr.bf16.mxu0 0
        %1334 = vmatmul.mubr.bf16.gmra.mxu0 %v1149
        %v1335 = vpop.f32.mrf.mxu0
        %v1336 = vadd.f32 %v1174, %v1335
        %v1337 = vpop.f32.mrf.mxu0
        %v1338 = vadd.f32 %v1178, %v1337
        %v1339 = vpop.f32.mrf.mxu0
        %v1340 = vadd.f32 %v1174, %v1339
        %v1341 = vpop.f32.mrf.mxu0
        %v1342 = vadd.f32 %v1178, %v1341
        %1343 = vmatprep.mubr.bf16.mxu0 0
        %1344 = vmatmul.mubr.bf16.gmra.mxu0 %v1150
        %v1345 = vpop.f32.mrf.mxu0
        %v1346 = vadd.f32 %v1174, %v1345
        %v1347 = vpop.f32.mrf.mxu0
        %v1348 = vadd.f32 %v1178, %v1347
        %v1349 = vpop.f32.mrf.mxu0
        %v1350 = vadd.f32 %v1174, %v1349
        %v1351 = vpop.f32.mrf.mxu0
        %v1352 = vadd.f32 %v1178, %v1351
        %1353 = vmatprep.mubr.bf16.mxu0 0
        %1354 = vmatmul.mubr.bf16.gmra.mxu0 %v1151
        %v1355 = vpop.f32.mrf.mxu0
        %v1356 = vadd.f32 %v1174, %v1355
        %v1357 = vpop.f32.mrf.mxu0
        %v1358 = vadd.f32 %v1178, %v1357
        %v1359 = vpop.f32.mrf.mxu0
        %v1360 = vadd.f32 %v1174, %v1359
        %v1361 = vpop.f32.mrf.mxu0
        %v1362 = vadd.f32 %v1178, %v1361
        %1363 = vmatprep.mubr.bf16.mxu0 0
        %1364 = vmatmul.mubr.bf16.gmra.mxu0 %v1152
        %v1365 = vpop.f32.mrf.mxu0
        %v1366 = vadd.f32 %v1174, %v1365
        %v1367 = vpop.f32.mrf.mxu0
        %v1368 = vadd.f32 %v1178, %v1367
        %v1369 = vpop.f32.mrf.mxu0
        %v1370 = vadd.f32 %v1174, %v1369
        %v1371 = vpop.f32.mrf.mxu0
        %v1372 = vadd.f32 %v1178, %v1371
        %1373 = vdwg.mxu0
        %v1374 = vld [vmem:[%s571] sm:$0xff]
        %v1375 = vld [vmem:[%s571 + $0x8] sm:$0xff]
        %v1376 = vld [vmem:[%s571 + $0x10] sm:$0xff]
        %v1377 = vld [vmem:[%s571 + $0x18] sm:$0xff]
        %v1378 = vld [vmem:[%s571 + $0x20] sm:$0xff]
        %v1379 = vld [vmem:[%s571 + $0x28] sm:$0xff]
        %v1380 = vld [vmem:[%s571 + $0x30] sm:$0xff]
        %v1381 = vld [vmem:[%s571 + $0x38] sm:$0xff]
        %v1382 = vld [vmem:[%s571 + $0x40] sm:$0xff]
        %v1383 = vld [vmem:[%s571 + $0x48] sm:$0xff]
        %v1384 = vld [vmem:[%s571 + $0x50] sm:$0xff]
        %v1385 = vld [vmem:[%s571 + $0x58] sm:$0xff]
        %v1386 = vld [vmem:[%s571 + $0x60] sm:$0xff]
        %v1387 = vld [vmem:[%s571 + $0x68] sm:$0xff]
        %v1388 = vld [vmem:[%s571 + $0x70] sm:$0xff]
        %v1389 = vld [vmem:[%s571 + $0x78] sm:$0xff]
        %v1390 = vmul.f32 %v1298, 0.5
        %v1391 = vmul.f32 %v1302, 0.5
        %v1392 = vmul.f32 %v1308, 0.5
        %v1393 = vmul.f32 %v1312, 0.5
        %v1394 = vmul.f32 %v1318, 0.5
        %v1395 = vmul.f32 %v1322, 0.5
        %v1396 = vmul.f32 %v1328, 0.5
        %v1397 = vmul.f32 %v1332, 0.5
        %v1398 = vmul.f32 %v1338, 0.5
        %v1399 = vmul.f32 %v1342, 0.5
        %v1400 = vmul.f32 %v1348, 0.5
        %v1401 = vmul.f32 %v1352, 0.5
        %v1402 = vmul.f32 %v1358, 0.5
        %v1403 = vmul.f32 %v1362, 0.5
        %v1404 = vmul.f32 %v1368, 0.5
        %v1405 = vmul.f32 %v1372, 0.5
        %v1406 = vmul.f32 %v1390, 1.442695
        %v1407 = vpow.pop %v1406
        %v1408 = vmul.f32 %v1391, 1.442695
        %v1409 = vpow.pop %v1408
        %v1410 = vmul.f32 %v1392, 1.442695
        %v1411 = vpow.pop %v1410
        %v1412 = vmul.f32 %v1393, 1.442695
        %v1413 = vpow.pop %v1412
        %v1414 = vmul.f32 %v1394, 1.442695
        %v1415 = vpow.pop %v1414
        %v1416 = vmul.f32 %v1395, 1.442695
        %v1417 = vpow.pop %v1416
        %v1418 = vmul.f32 %v1396, 1.442695
        %v1419 = vpow.pop %v1418
        %v1420 = vmul.f32 %v1397, 1.442695
        %v1421 = vpow.pop %v1420
        %v1422 = vmul.f32 %v1398, 1.442695
        %v1423 = vpow.pop %v1422
        %v1424 = vmul.f32 %v1399, 1.442695
        %v1425 = vpow.pop %v1424
        %v1426 = vmul.f32 %v1400, 1.442695
        %v1427 = vpow.pop %v1426
        %v1428 = vmul.f32 %v1401, 1.442695
        %v1429 = vpow.pop %v1428
        %v1430 = vmul.f32 %v1402, 1.442695
        %v1431 = vpow.pop %v1430
        %v1432 = vmul.f32 %v1403, 1.442695
        %v1433 = vpow.pop %v1432
        %v1434 = vmul.f32 %v1404, 1.442695
        %v1435 = vpow.pop %v1434
        %v1436 = vmul.f32 %v1405, 1.442695
        %v1437 = vpow.pop %v1436
        %v1438 = vmul.f32 %v1374, %v1407
        %v1439 = vmul.f32 %v1375, %v1409
        %v1440 = vmul.f32 %v1376, %v1411
        %v1441 = vmul.f32 %v1377, %v1413
        %v1442 = vmul.f32 %v1378, %v1415
        %v1443 = vmul.f32 %v1379, %v1417
        %v1444 = vmul.f32 %v1380, %v1419
        %v1445 = vmul.f32 %v1381, %v1421
        %v1446 = vmul.f32 %v1382, %v1423
        %v1447 = vmul.f32 %v1383, %v1425
        %v1448 = vmul.f32 %v1384, %v1427
        %v1449 = vmul.f32 %v1385, %v1429
        %v1450 = vmul.f32 %v1386, %v1431
        %v1451 = vmul.f32 %v1387, %v1433
        %v1452 = vmul.f32 %v1388, %v1435
        %v1453 = vmul.f32 %v1389, %v1437
        %v1454 = vadd.f32 %v1296, %v1438
        %v1455 = vadd.f32 %v1300, %v1439
        %v1456 = vadd.f32 %v1306, %v1440
        %v1457 = vadd.f32 %v1310, %v1441
        %v1458 = vadd.f32 %v1316, %v1442
        %v1459 = vadd.f32 %v1320, %v1443
        %v1460 = vadd.f32 %v1326, %v1444
        %v1461 = vadd.f32 %v1330, %v1445
        %v1462 = vadd.f32 %v1336, %v1446
        %v1463 = vadd.f32 %v1340, %v1447
        %v1464 = vadd.f32 %v1346, %v1448
        %v1465 = vadd.f32 %v1350, %v1449
        %v1466 = vadd.f32 %v1356, %v1450
        %v1467 = vadd.f32 %v1360, %v1451
        %v1468 = vadd.f32 %v1366, %v1452
        %v1469 = vadd.f32 %v1370, %v1453
        %v1470 = vpack.c.bf16 %v1455, %v1454
        %v1471 = vpack.c.bf16 %v1457, %v1456
        %v1472 = vpack.c.bf16 %v1459, %v1458
        %v1473 = vpack.c.bf16 %v1461, %v1460
        %v1474 = vpack.c.bf16 %v1463, %v1462
        %v1475 = vpack.c.bf16 %v1465, %v1464
        %v1476 = vpack.c.bf16 %v1467, %v1466
        %v1477 = vpack.c.bf16 %v1469, %v1468
        %v1478 = vld [vmem:[#allocation11] sm:$0xf]
        %v1479 = vld [vmem:[#allocation11 + $0x4] sm:$0xf]
        %v1480 = vld [vmem:[#allocation11 + $0x8] sm:$0xf]
        %v1481 = vld [vmem:[#allocation11 + $0xc] sm:$0xf]
        %v1482 = vld [vmem:[#allocation11 + $0x10] sm:$0xf]
        %v1483 = vld [vmem:[#allocation11 + $0x14] sm:$0xf]
        %v1484 = vld [vmem:[#allocation11 + $0x18] sm:$0xf]
        %v1485 = vld [vmem:[#allocation11 + $0x1c] sm:$0xf]
        %v1486 = vld [vmem:[#allocation11 + $0x20] sm:$0xf]
        %v1487 = vld [vmem:[#allocation11 + $0x24] sm:$0xf]
        %v1488 = vld [vmem:[#allocation11 + $0x28] sm:$0xf]
        %v1489 = vld [vmem:[#allocation11 + $0x2c] sm:$0xf]
        %v1490 = vld [vmem:[#allocation11 + $0x30] sm:$0xf]
        %v1491 = vld [vmem:[#allocation11 + $0x34] sm:$0xf]
        %v1492 = vld [vmem:[#allocation11 + $0x38] sm:$0xf]
        %v1493 = vld [vmem:[#allocation11 + $0x3c] sm:$0xf]
        %v1494 = vld [vmem:[%s9] sm:$0x1]
        %v1496 = vlaneseq
        %v1497 = vshrl.u32 %v1496, 7
        %v1498 = vsub.s32 0, %v1497
        %v1499 = vrot.slane %v1494, %v1498
        %v1517 = vunpack.c.l.b16 %v1478
        %v1518 = vunpack.c.l.b16 %v1479
        %v1519 = vunpack.c.l.b16 %v1480
        %v1520 = vunpack.c.l.b16 %v1481
        %v1521 = vunpack.c.l.b16 %v1482
        %v1522 = vunpack.c.l.b16 %v1483
        %v1523 = vunpack.c.l.b16 %v1484
        %v1524 = vunpack.c.l.b16 %v1485
        %v1525 = vunpack.c.l.b16 %v1486
        %v1526 = vunpack.c.l.b16 %v1487
        %v1527 = vunpack.c.l.b16 %v1488
        %v1528 = vunpack.c.l.b16 %v1489
        %v1529 = vunpack.c.l.b16 %v1490
        %v1530 = vunpack.c.l.b16 %v1491
        %v1531 = vunpack.c.l.b16 %v1492
        %v1532 = vunpack.c.l.b16 %v1493
        %v1533 = vpack.c.b16 %v1518, %v1517
        %v1534 = vpack.c.b16 %v1520, %v1519
        %v1535 = vpack.c.b16 %v1522, %v1521
        %v1536 = vpack.c.b16 %v1524, %v1523
        %v1537 = vpack.c.b16 %v1526, %v1525
        %v1538 = vpack.c.b16 %v1528, %v1527
        %v1539 = vpack.c.b16 %v1530, %v1529
        %v1540 = vpack.c.b16 %v1532, %v1531
        %1549 = vmatprep.subr.bf16.mxu0 0
        %1550 = vmatpush1.bf16.msra.mxu0 %v1540
        %1551 = vmatprep.subr.bf16.mxu0 0
        %1552 = vmatpush1.bf16.msra.mxu0 %v1539
        %1553 = vmatprep.subr.bf16.mxu0 0
        %1554 = vmatpush1.bf16.msra.mxu0 %v1538
        %1555 = vmatprep.subr.bf16.mxu0 0
        %1556 = vmatpush1.bf16.msra.mxu0 %v1537
        %1557 = vmatprep.subr.bf16.mxu0 0
        %1558 = vmatpush1.bf16.msra.mxu0 %v1536
        %1559 = vmatprep.subr.bf16.mxu0 0
        %1560 = vmatpush1.bf16.msra.mxu0 %v1535
        %1561 = vmatprep.subr.bf16.mxu0 0
        %1562 = vmatpush1.bf16.msra.mxu0 %v1534
        %1563 = vmatprep.subr.bf16.mxu0 0
        %1564 = vmatpush1.bf16.msra.mxu0 %v1533
        %1565 = vmatprep.subr.bf16.mxu0 0
        %1566 = vmatpush2.bf16.msra.mxu0 0
        %1567 = vmatprep.subr.bf16.mxu0 0
        %1568 = vmatpush2.bf16.msra.mxu0 0
        %1569 = vmatprep.subr.bf16.mxu0 0
        %1570 = vmatpush2.bf16.msra.mxu0 0
        %1571 = vmatprep.subr.bf16.mxu0 0
        %1572 = vmatpush2.bf16.msra.mxu0 0
        %1573 = vmatprep.subr.bf16.mxu0 0
        %1574 = vmatpush2.bf16.msra.mxu0 0
        %1575 = vmatprep.subr.bf16.mxu0 0
        %1576 = vmatpush2.bf16.msra.mxu0 0
        %1577 = vmatprep.subr.bf16.mxu0 0
        %1578 = vmatpush2.bf16.msra.mxu0 0
        %1579 = vmatprep.subr.bf16.mxu0 0
        %1580 = vmatpush2.bf16.msra.mxu0 0
        %1581 = vmatprep.mubr.bf16.mxu0 0
        %1582 = vmatmul.mubr.bf16.gmra.mxu0 %v1470
        %v1583 = vpop.f32.mrf.mxu0
        %v1584 = vadd.f32 %v1499, %v1583
        %v1585 = vpop.f32.mrf.mxu0
        %v1586 = vpop.f32.mrf.mxu0
        %v1587 = vadd.f32 %v1499, %v1586
        %v1588 = vpop.f32.mrf.mxu0
        %1589 = vmatprep.mubr.bf16.mxu0 0
        %1590 = vmatmul.mubr.bf16.gmra.mxu0 %v1471
        %v1591 = vpop.f32.mrf.mxu0
        %v1592 = vadd.f32 %v1499, %v1591
        %v1593 = vpop.f32.mrf.mxu0
        %v1594 = vpop.f32.mrf.mxu0
        %v1595 = vadd.f32 %v1499, %v1594
        %v1596 = vpop.f32.mrf.mxu0
        %1597 = vmatprep.mubr.bf16.mxu0 0
        %1598 = vmatmul.mubr.bf16.gmra.mxu0 %v1472
        %v1599 = vpop.f32.mrf.mxu0
        %v1600 = vadd.f32 %v1499, %v1599
        %v1601 = vpop.f32.mrf.mxu0
        %v1602 = vpop.f32.mrf.mxu0
        %v1603 = vadd.f32 %v1499, %v1602
        %v1604 = vpop.f32.mrf.mxu0
        %1605 = vmatprep.mubr.bf16.mxu0 0
        %1606 = vmatmul.mubr.bf16.gmra.mxu0 %v1473
        %v1607 = vpop.f32.mrf.mxu0
        %v1608 = vadd.f32 %v1499, %v1607
        %v1609 = vpop.f32.mrf.mxu0
        %v1610 = vpop.f32.mrf.mxu0
        %v1611 = vadd.f32 %v1499, %v1610
        %v1612 = vpop.f32.mrf.mxu0
        %1613 = vmatprep.mubr.bf16.mxu0 0
        %1614 = vmatmul.mubr.bf16.gmra.mxu0 %v1474
        %v1615 = vpop.f32.mrf.mxu0
        %v1616 = vadd.f32 %v1499, %v1615
        %v1617 = vpop.f32.mrf.mxu0
        %v1618 = vpop.f32.mrf.mxu0
        %v1619 = vadd.f32 %v1499, %v1618
        %v1620 = vpop.f32.mrf.mxu0
        %1621 = vmatprep.mubr.bf16.mxu0 0
        %1622 = vmatmul.mubr.bf16.gmra.mxu0 %v1475
        %v1623 = vpop.f32.mrf.mxu0
        %v1624 = vadd.f32 %v1499, %v1623
        %v1625 = vpop.f32.mrf.mxu0
        %v1626 = vpop.f32.mrf.mxu0
        %v1627 = vadd.f32 %v1499, %v1626
        %v1628 = vpop.f32.mrf.mxu0
        %1629 = vmatprep.mubr.bf16.mxu0 0
        %1630 = vmatmul.mubr.bf16.gmra.mxu0 %v1476
        %v1631 = vpop.f32.mrf.mxu0
        %v1632 = vadd.f32 %v1499, %v1631
        %v1633 = vpop.f32.mrf.mxu0
        %v1634 = vpop.f32.mrf.mxu0
        %v1635 = vadd.f32 %v1499, %v1634
        %v1636 = vpop.f32.mrf.mxu0
        %1637 = vmatprep.mubr.bf16.mxu0 0
        %1638 = vmatmul.mubr.bf16.gmra.mxu0 %v1477
        %v1639 = vpop.f32.mrf.mxu0
        %v1640 = vadd.f32 %v1499, %v1639
        %v1641 = vpop.f32.mrf.mxu0
        %v1642 = vpop.f32.mrf.mxu0
        %v1643 = vadd.f32 %v1499, %v1642
        %v1644 = vpop.f32.mrf.mxu0
        %1645 = vdwg.mxu0
        %v1646 = vmax.f32 %v1584, 0.0
        %v1647 = vmax.f32 %v1587, 0.0
        %v1648 = vmax.f32 %v1592, 0.0
        %v1649 = vmax.f32 %v1595, 0.0
        %v1650 = vmax.f32 %v1600, 0.0
        %v1651 = vmax.f32 %v1603, 0.0
        %v1652 = vmax.f32 %v1608, 0.0
        %v1653 = vmax.f32 %v1611, 0.0
        %v1654 = vmax.f32 %v1616, 0.0
        %v1655 = vmax.f32 %v1619, 0.0
        %v1656 = vmax.f32 %v1624, 0.0
        %v1657 = vmax.f32 %v1627, 0.0
        %v1658 = vmax.f32 %v1632, 0.0
        %v1659 = vmax.f32 %v1635, 0.0
        %v1660 = vmax.f32 %v1640, 0.0
        %v1661 = vmax.f32 %v1643, 0.0
        %v1662 = vpack.c.bf16 %v1647, %v1646
        %v1663 = vpack.c.bf16 %v1649, %v1648
        %v1664 = vpack.c.bf16 %v1651, %v1650
        %v1665 = vpack.c.bf16 %v1653, %v1652
        %v1666 = vpack.c.bf16 %v1655, %v1654
        %v1667 = vpack.c.bf16 %v1657, %v1656
        %v1668 = vpack.c.bf16 %v1659, %v1658
        %v1669 = vpack.c.bf16 %v1661, %v1660
        %v1670 = vld [vmem:[#allocation13] sm:$0xf]
        %v1671 = vld [vmem:[#allocation13 + $0x4] sm:$0xf]
        %v1672 = vld [vmem:[#allocation13 + $0x8] sm:$0xf]
        %v1673 = vld [vmem:[#allocation13 + $0xc] sm:$0xf]
        %v1674 = vld [vmem:[#allocation13 + $0x10] sm:$0xf]
        %v1675 = vld [vmem:[#allocation13 + $0x14] sm:$0xf]
        %v1676 = vld [vmem:[#allocation13 + $0x18] sm:$0xf]
        %v1677 = vld [vmem:[#allocation13 + $0x1c] sm:$0xf]
        %v1678 = vld [vmem:[#allocation13 + $0x20] sm:$0xf]
        %v1679 = vld [vmem:[#allocation13 + $0x24] sm:$0xf]
        %v1680 = vld [vmem:[#allocation13 + $0x28] sm:$0xf]
        %v1681 = vld [vmem:[#allocation13 + $0x2c] sm:$0xf]
        %v1682 = vld [vmem:[#allocation13 + $0x30] sm:$0xf]
        %v1683 = vld [vmem:[#allocation13 + $0x34] sm:$0xf]
        %v1684 = vld [vmem:[#allocation13 + $0x38] sm:$0xf]
        %v1685 = vld [vmem:[#allocation13 + $0x3c] sm:$0xf]
        %v1686 = vld [vmem:[%s11] sm:$0x1]
        %v1688 = vlaneseq
        %v1689 = vshrl.u32 %v1688, 7
        %v1690 = vsub.s32 0, %v1689
        %v1691 = vrot.slane %v1686, %v1690
        %v1709 = vunpack.c.l.b16 %v1670
        %v1710 = vunpack.c.l.b16 %v1671
        %v1711 = vunpack.c.l.b16 %v1672
        %v1712 = vunpack.c.l.b16 %v1673
        %v1713 = vunpack.c.l.b16 %v1674
        %v1714 = vunpack.c.l.b16 %v1675
        %v1715 = vunpack.c.l.b16 %v1676
        %v1716 = vunpack.c.l.b16 %v1677
        %v1717 = vunpack.c.l.b16 %v1678
        %v1718 = vunpack.c.l.b16 %v1679
        %v1719 = vunpack.c.l.b16 %v1680
        %v1720 = vunpack.c.l.b16 %v1681
        %v1721 = vunpack.c.l.b16 %v1682
        %v1722 = vunpack.c.l.b16 %v1683
        %v1723 = vunpack.c.l.b16 %v1684
        %v1724 = vunpack.c.l.b16 %v1685
        %v1725 = vpack.c.b16 %v1710, %v1709
        %v1726 = vpack.c.b16 %v1712, %v1711
        %v1727 = vpack.c.b16 %v1714, %v1713
        %v1728 = vpack.c.b16 %v1716, %v1715
        %v1729 = vpack.c.b16 %v1718, %v1717
        %v1730 = vpack.c.b16 %v1720, %v1719
        %v1731 = vpack.c.b16 %v1722, %v1721
        %v1732 = vpack.c.b16 %v1724, %v1723
        %1741 = vmatprep.subr.bf16.mxu0 0
        %1742 = vmatpush1.bf16.msra.mxu0 %v1732
        %1743 = vmatprep.subr.bf16.mxu0 0
        %1744 = vmatpush1.bf16.msra.mxu0 %v1731
        %1745 = vmatprep.subr.bf16.mxu0 0
        %1746 = vmatpush1.bf16.msra.mxu0 %v1730
        %1747 = vmatprep.subr.bf16.mxu0 0
        %1748 = vmatpush1.bf16.msra.mxu0 %v1729
        %1749 = vmatprep.subr.bf16.mxu0 0
        %1750 = vmatpush1.bf16.msra.mxu0 %v1728
        %1751 = vmatprep.subr.bf16.mxu0 0
        %1752 = vmatpush1.bf16.msra.mxu0 %v1727
        %1753 = vmatprep.subr.bf16.mxu0 0
        %1754 = vmatpush1.bf16.msra.mxu0 %v1726
        %1755 = vmatprep.subr.bf16.mxu0 0
        %1756 = vmatpush1.bf16.msra.mxu0 %v1725
        %1757 = vmatprep.subr.bf16.mxu0 0
        %1758 = vmatpush2.bf16.msra.mxu0 0
        %1759 = vmatprep.subr.bf16.mxu0 0
        %1760 = vmatpush2.bf16.msra.mxu0 0
        %1761 = vmatprep.subr.bf16.mxu0 0
        %1762 = vmatpush2.bf16.msra.mxu0 0
        %1763 = vmatprep.subr.bf16.mxu0 0
        %1764 = vmatpush2.bf16.msra.mxu0 0
        %1765 = vmatprep.subr.bf16.mxu0 0
        %1766 = vmatpush2.bf16.msra.mxu0 0
        %1767 = vmatprep.subr.bf16.mxu0 0
        %1768 = vmatpush2.bf16.msra.mxu0 0
        %1769 = vmatprep.subr.bf16.mxu0 0
        %1770 = vmatpush2.bf16.msra.mxu0 0
        %1771 = vmatprep.subr.bf16.mxu0 0
        %1772 = vmatpush2.bf16.msra.mxu0 0
        %1773 = vmatprep.mubr.bf16.mxu0 0
        %1774 = vmatmul.mubr.bf16.gmra.mxu0 %v1662
        %v1775 = vpop.f32.mrf.mxu0
        %v1776 = vadd.f32 %v1691, %v1775
        %v1777 = vpop.f32.mrf.mxu0
        %v1778 = vpop.f32.mrf.mxu0
        %v1779 = vadd.f32 %v1691, %v1778
        %v1780 = vpop.f32.mrf.mxu0
        %1781 = vmatprep.mubr.bf16.mxu0 0
        %1782 = vmatmul.mubr.bf16.gmra.mxu0 %v1663
        %v1783 = vpop.f32.mrf.mxu0
        %v1784 = vadd.f32 %v1691, %v1783
        %v1785 = vpop.f32.mrf.mxu0
        %v1786 = vpop.f32.mrf.mxu0
        %v1787 = vadd.f32 %v1691, %v1786
        %v1788 = vpop.f32.mrf.mxu0
        %1789 = vmatprep.mubr.bf16.mxu0 0
        %1790 = vmatmul.mubr.bf16.gmra.mxu0 %v1664
        %v1791 = vpop.f32.mrf.mxu0
        %v1792 = vadd.f32 %v1691, %v1791
        %v1793 = vpop.f32.mrf.mxu0
        %v1794 = vpop.f32.mrf.mxu0
        %v1795 = vadd.f32 %v1691, %v1794
        %v1796 = vpop.f32.mrf.mxu0
        %1797 = vmatprep.mubr.bf16.mxu0 0
        %1798 = vmatmul.mubr.bf16.gmra.mxu0 %v1665
        %v1799 = vpop.f32.mrf.mxu0
        %v1800 = vadd.f32 %v1691, %v1799
        %v1801 = vpop.f32.mrf.mxu0
        %v1802 = vpop.f32.mrf.mxu0
        %v1803 = vadd.f32 %v1691, %v1802
        %v1804 = vpop.f32.mrf.mxu0
        %1805 = vmatprep.mubr.bf16.mxu0 0
        %1806 = vmatmul.mubr.bf16.gmra.mxu0 %v1666
        %v1807 = vpop.f32.mrf.mxu0
        %v1808 = vadd.f32 %v1691, %v1807
        %v1809 = vpop.f32.mrf.mxu0
        %v1810 = vpop.f32.mrf.mxu0
        %v1811 = vadd.f32 %v1691, %v1810
        %v1812 = vpop.f32.mrf.mxu0
        %1813 = vmatprep.mubr.bf16.mxu0 0
        %1814 = vmatmul.mubr.bf16.gmra.mxu0 %v1667
        %v1815 = vpop.f32.mrf.mxu0
        %v1816 = vadd.f32 %v1691, %v1815
        %v1817 = vpop.f32.mrf.mxu0
        %v1818 = vpop.f32.mrf.mxu0
        %v1819 = vadd.f32 %v1691, %v1818
        %v1820 = vpop.f32.mrf.mxu0
        %1821 = vmatprep.mubr.bf16.mxu0 0
        %1822 = vmatmul.mubr.bf16.gmra.mxu0 %v1668
        %v1823 = vpop.f32.mrf.mxu0
        %v1824 = vadd.f32 %v1691, %v1823
        %v1825 = vpop.f32.mrf.mxu0
        %v1826 = vpop.f32.mrf.mxu0
        %v1827 = vadd.f32 %v1691, %v1826
        %v1828 = vpop.f32.mrf.mxu0
        %1829 = vmatprep.mubr.bf16.mxu0 0
        %1830 = vmatmul.mubr.bf16.gmra.mxu0 %v1669
        %v1831 = vpop.f32.mrf.mxu0
        %v1832 = vadd.f32 %v1691, %v1831
        %v1833 = vpop.f32.mrf.mxu0
        %v1834 = vpop.f32.mrf.mxu0
        %v1835 = vadd.f32 %v1691, %v1834
        %v1836 = vpop.f32.mrf.mxu0
        %1837 = vdwg.mxu0
        %v1838 = vmax.f32 %v1776, 0.0
        %v1839 = vmax.f32 %v1779, 0.0
        %v1840 = vmax.f32 %v1784, 0.0
        %v1841 = vmax.f32 %v1787, 0.0
        %v1842 = vmax.f32 %v1792, 0.0
        %v1843 = vmax.f32 %v1795, 0.0
        %v1844 = vmax.f32 %v1800, 0.0
        %v1845 = vmax.f32 %v1803, 0.0
        %v1846 = vmax.f32 %v1808, 0.0
        %v1847 = vmax.f32 %v1811, 0.0
        %v1848 = vmax.f32 %v1816, 0.0
        %v1849 = vmax.f32 %v1819, 0.0
        %v1850 = vmax.f32 %v1824, 0.0
        %v1851 = vmax.f32 %v1827, 0.0
        %v1852 = vmax.f32 %v1832, 0.0
        %v1853 = vmax.f32 %v1835, 0.0
        %v1854 = vpack.c.bf16 %v1839, %v1838
        %v1855 = vpack.c.bf16 %v1841, %v1840
        %v1856 = vpack.c.bf16 %v1843, %v1842
        %v1857 = vpack.c.bf16 %v1845, %v1844
        %v1858 = vpack.c.bf16 %v1847, %v1846
        %v1859 = vpack.c.bf16 %v1849, %v1848
        %v1860 = vpack.c.bf16 %v1851, %v1850
        %v1861 = vpack.c.bf16 %v1853, %v1852
        %v1862 = vld [vmem:[#allocation14] sm:$0xff]
        %v1863 = vld [vmem:[#allocation14 + $0x8] sm:$0xff]
        %v1864 = vld [vmem:[#allocation14 + $0x10] sm:$0xff]
        %v1865 = vld [vmem:[#allocation14 + $0x18] sm:$0xff]
        %v1866 = vld [vmem:[#allocation14 + $0x20] sm:$0xff]
        %v1867 = vld [vmem:[#allocation14 + $0x28] sm:$0xff]
        %v1868 = vld [vmem:[#allocation14 + $0x30] sm:$0xff]
        %v1869 = vld [vmem:[#allocation14 + $0x38] sm:$0xff]
        %v1870 = vld [vmem:[#allocation14 + $0x40] sm:$0xff]
        %v1871 = vld [vmem:[#allocation14 + $0x48] sm:$0xff]
        %v1872 = vld [vmem:[#allocation14 + $0x50] sm:$0xff]
        %v1873 = vld [vmem:[#allocation14 + $0x58] sm:$0xff]
        %v1874 = vld [vmem:[#allocation14 + $0x60] sm:$0xff]
        %v1875 = vld [vmem:[#allocation14 + $0x68] sm:$0xff]
        %v1876 = vld [vmem:[#allocation14 + $0x70] sm:$0xff]
        %v1877 = vld [vmem:[#allocation14 + $0x78] sm:$0xff]
        %v1878 = vld [vmem:[%s13] sm:$0x3]
        %v1880 = vlaneseq
        %v1881 = vshrl.u32 %v1880, 7
        %v1882 = vsub.s32 0, %v1881
        %v1883 = vrot.slane %v1878, %v1882
        %v1884 = vlaneseq
        %v1885 = vshrl.u32 %v1884, 7
        %v1886 = vsub.s32 1, %v1885
        %v1887 = vrot.slane %v1878, %v1886
        %v1906 = vunpack.c.l.b16 %v1862
        %v1907 = vunpack.c.h.b16 %v1862
        %v1908 = vunpack.c.l.b16 %v1863
        %v1909 = vunpack.c.h.b16 %v1863
        %v1910 = vunpack.c.l.b16 %v1864
        %v1911 = vunpack.c.h.b16 %v1864
        %v1912 = vunpack.c.l.b16 %v1865
        %v1913 = vunpack.c.h.b16 %v1865
        %v1914 = vunpack.c.l.b16 %v1866
        %v1915 = vunpack.c.h.b16 %v1866
        %v1916 = vunpack.c.l.b16 %v1867
        %v1917 = vunpack.c.h.b16 %v1867
        %v1918 = vunpack.c.l.b16 %v1868
        %v1919 = vunpack.c.h.b16 %v1868
        %v1920 = vunpack.c.l.b16 %v1869
        %v1921 = vunpack.c.h.b16 %v1869
        %v1922 = vunpack.c.l.b16 %v1870
        %v1923 = vunpack.c.h.b16 %v1870
        %v1924 = vunpack.c.l.b16 %v1871
        %v1925 = vunpack.c.h.b16 %v1871
        %v1926 = vunpack.c.l.b16 %v1872
        %v1927 = vunpack.c.h.b16 %v1872
        %v1928 = vunpack.c.l.b16 %v1873
        %v1929 = vunpack.c.h.b16 %v1873
        %v1930 = vunpack.c.l.b16 %v1874
        %v1931 = vunpack.c.h.b16 %v1874
        %v1932 = vunpack.c.l.b16 %v1875
        %v1933 = vunpack.c.h.b16 %v1875
        %v1934 = vunpack.c.l.b16 %v1876
        %v1935 = vunpack.c.h.b16 %v1876
        %v1936 = vunpack.c.l.b16 %v1877
        %v1937 = vunpack.c.h.b16 %v1877
        %v1938 = vpack.c.b16 %v1908, %v1906
        %v1939 = vpack.c.b16 %v1909, %v1907
        %v1940 = vpack.c.b16 %v1912, %v1910
        %v1941 = vpack.c.b16 %v1913, %v1911
        %v1942 = vpack.c.b16 %v1916, %v1914
        %v1943 = vpack.c.b16 %v1917, %v1915
        %v1944 = vpack.c.b16 %v1920, %v1918
        %v1945 = vpack.c.b16 %v1921, %v1919
        %v1946 = vpack.c.b16 %v1924, %v1922
        %v1947 = vpack.c.b16 %v1925, %v1923
        %v1948 = vpack.c.b16 %v1928, %v1926
        %v1949 = vpack.c.b16 %v1929, %v1927
        %v1950 = vpack.c.b16 %v1932, %v1930
        %v1951 = vpack.c.b16 %v1933, %v1931
        %v1952 = vpack.c.b16 %v1936, %v1934
        %v1953 = vpack.c.b16 %v1937, %v1935
        %1970 = vmatprep.subr.bf16.mxu0 %v1953
        %1971 = vmatpush1.bf16.msra.mxu0 %v1952
        %1972 = vmatprep.subr.bf16.mxu0 %v1951
        %1973 = vmatpush1.bf16.msra.mxu0 %v1950
        %1974 = vmatprep.subr.bf16.mxu0 %v1949
        %1975 = vmatpush1.bf16.msra.mxu0 %v1948
        %1976 = vmatprep.subr.bf16.mxu0 %v1947
        %1977 = vmatpush1.bf16.msra.mxu0 %v1946
        %1978 = vmatprep.subr.bf16.mxu0 %v1945
        %1979 = vmatpush1.bf16.msra.mxu0 %v1944
        %1980 = vmatprep.subr.bf16.mxu0 %v1943
        %1981 = vmatpush1.bf16.msra.mxu0 %v1942
        %1982 = vmatprep.subr.bf16.mxu0 %v1941
        %1983 = vmatpush1.bf16.msra.mxu0 %v1940
        %1984 = vmatprep.subr.bf16.mxu0 %v1939
        %1985 = vmatpush1.bf16.msra.mxu0 %v1938
        %1986 = vmatprep.subr.bf16.mxu0 0
        %1987 = vmatpush2.bf16.msra.mxu0 0
        %1988 = vmatprep.subr.bf16.mxu0 0
        %1989 = vmatpush2.bf16.msra.mxu0 0
        %1990 = vmatprep.subr.bf16.mxu0 0
        %1991 = vmatpush2.bf16.msra.mxu0 0
        %1992 = vmatprep.subr.bf16.mxu0 0
        %1993 = vmatpush2.bf16.msra.mxu0 0
        %1994 = vmatprep.subr.bf16.mxu0 0
        %1995 = vmatpush2.bf16.msra.mxu0 0
        %1996 = vmatprep.subr.bf16.mxu0 0
        %1997 = vmatpush2.bf16.msra.mxu0 0
        %1998 = vmatprep.subr.bf16.mxu0 0
        %1999 = vmatpush2.bf16.msra.mxu0 0
        %2000 = vmatprep.subr.bf16.mxu0 0
        %2001 = vmatpush2.bf16.msra.mxu0 0
        %2002 = vmatprep.mubr.bf16.mxu0 0
        %2003 = vmatmul.mubr.bf16.gmra.mxu0 %v1854
        %v2004 = vpop.f32.mrf.mxu0
        %v2005 = vadd.f32 %v1883, %v2004
        %v2006 = vpop.f32.mrf.mxu0
        %v2007 = vadd.f32 %v1887, %v2006
        %v2008 = vpop.f32.mrf.mxu0
        %v2009 = vadd.f32 %v1883, %v2008
        %v2010 = vpop.f32.mrf.mxu0
        %v2011 = vadd.f32 %v1887, %v2010
        %2012 = vmatprep.mubr.bf16.mxu0 0
        %2013 = vmatmul.mubr.bf16.gmra.mxu0 %v1855
        %v2014 = vpop.f32.mrf.mxu0
        %v2015 = vadd.f32 %v1883, %v2014
        %v2016 = vpop.f32.mrf.mxu0
        %v2017 = vadd.f32 %v1887, %v2016
        %v2018 = vpop.f32.mrf.mxu0
        %v2019 = vadd.f32 %v1883, %v2018
        %v2020 = vpop.f32.mrf.mxu0
        %v2021 = vadd.f32 %v1887, %v2020
        %2022 = vmatprep.mubr.bf16.mxu0 0
        %2023 = vmatmul.mubr.bf16.gmra.mxu0 %v1856
        %v2024 = vpop.f32.mrf.mxu0
        %v2025 = vadd.f32 %v1883, %v2024
        %v2026 = vpop.f32.mrf.mxu0
        %v2027 = vadd.f32 %v1887, %v2026
        %v2028 = vpop.f32.mrf.mxu0
        %v2029 = vadd.f32 %v1883, %v2028
        %v2030 = vpop.f32.mrf.mxu0
        %v2031 = vadd.f32 %v1887, %v2030
        %2032 = vmatprep.mubr.bf16.mxu0 0
        %2033 = vmatmul.mubr.bf16.gmra.mxu0 %v1857
        %v2034 = vpop.f32.mrf.mxu0
        %v2035 = vadd.f32 %v1883, %v2034
        %v2036 = vpop.f32.mrf.mxu0
        %v2037 = vadd.f32 %v1887, %v2036
        %v2038 = vpop.f32.mrf.mxu0
        %v2039 = vadd.f32 %v1883, %v2038
        %v2040 = vpop.f32.mrf.mxu0
        %v2041 = vadd.f32 %v1887, %v2040
        %2042 = vmatprep.mubr.bf16.mxu0 0
        %2043 = vmatmul.mubr.bf16.gmra.mxu0 %v1858
        %v2044 = vpop.f32.mrf.mxu0
        %v2045 = vadd.f32 %v1883, %v2044
        %v2046 = vpop.f32.mrf.mxu0
        %v2047 = vadd.f32 %v1887, %v2046
        %v2048 = vpop.f32.mrf.mxu0
        %v2049 = vadd.f32 %v1883, %v2048
        %v2050 = vpop.f32.mrf.mxu0
        %v2051 = vadd.f32 %v1887, %v2050
        %2052 = vmatprep.mubr.bf16.mxu0 0
        %2053 = vmatmul.mubr.bf16.gmra.mxu0 %v1859
        %v2054 = vpop.f32.mrf.mxu0
        %v2055 = vadd.f32 %v1883, %v2054
        %v2056 = vpop.f32.mrf.mxu0
        %v2057 = vadd.f32 %v1887, %v2056
        %v2058 = vpop.f32.mrf.mxu0
        %v2059 = vadd.f32 %v1883, %v2058
        %v2060 = vpop.f32.mrf.mxu0
        %v2061 = vadd.f32 %v1887, %v2060
        %2062 = vmatprep.mubr.bf16.mxu0 0
        %2063 = vmatmul.mubr.bf16.gmra.mxu0 %v1860
        %v2064 = vpop.f32.mrf.mxu0
        %v2065 = vadd.f32 %v1883, %v2064
        %v2066 = vpop.f32.mrf.mxu0
        %v2067 = vadd.f32 %v1887, %v2066
        %v2068 = vpop.f32.mrf.mxu0
        %v2069 = vadd.f32 %v1883, %v2068
        %v2070 = vpop.f32.mrf.mxu0
        %v2071 = vadd.f32 %v1887, %v2070
        %2072 = vmatprep.mubr.bf16.mxu0 0
        %2073 = vmatmul.mubr.bf16.gmra.mxu0 %v1861
        %v2074 = vpop.f32.mrf.mxu0
        %v2075 = vadd.f32 %v1883, %v2074
        %v2076 = vpop.f32.mrf.mxu0
        %v2077 = vadd.f32 %v1887, %v2076
        %v2078 = vpop.f32.mrf.mxu0
        %v2079 = vadd.f32 %v1883, %v2078
        %v2080 = vpop.f32.mrf.mxu0
        %v2081 = vadd.f32 %v1887, %v2080
        %2082 = vdwg.mxu0
        %v2083 = vxor.u32 %v2005, 2147483648
        %v2084 = vxor.u32 %v2007, 2147483648
        %v2085 = vxor.u32 %v2009, 2147483648
        %v2086 = vxor.u32 %v2011, 2147483648
        %v2087 = vxor.u32 %v2015, 2147483648
        %v2088 = vxor.u32 %v2017, 2147483648
        %v2089 = vxor.u32 %v2019, 2147483648
        %v2090 = vxor.u32 %v2021, 2147483648
        %v2091 = vxor.u32 %v2025, 2147483648
        %v2092 = vxor.u32 %v2027, 2147483648
        %v2093 = vxor.u32 %v2029, 2147483648
        %v2094 = vxor.u32 %v2031, 2147483648
        %v2095 = vxor.u32 %v2035, 2147483648
        %v2096 = vxor.u32 %v2037, 2147483648
        %v2097 = vxor.u32 %v2039, 2147483648
        %v2098 = vxor.u32 %v2041, 2147483648
        %v2099 = vxor.u32 %v2045, 2147483648
        %v2100 = vxor.u32 %v2047, 2147483648
        %v2101 = vxor.u32 %v2049, 2147483648
        %v2102 = vxor.u32 %v2051, 2147483648
        %v2103 = vxor.u32 %v2055, 2147483648
        %v2104 = vxor.u32 %v2057, 2147483648
        %v2105 = vxor.u32 %v2059, 2147483648
        %v2106 = vxor.u32 %v2061, 2147483648
        %v2107 = vxor.u32 %v2065, 2147483648
        %v2108 = vxor.u32 %v2067, 2147483648
        %v2109 = vxor.u32 %v2069, 2147483648
        %v2110 = vxor.u32 %v2071, 2147483648
        %v2111 = vxor.u32 %v2075, 2147483648
        %v2112 = vxor.u32 %v2077, 2147483648
        %v2113 = vxor.u32 %v2079, 2147483648
        %v2114 = vxor.u32 %v2081, 2147483648
        %v2115 = vmul.f32 %v2083, 1.442695
        %v2116 = vpow.pop %v2115
        %v2117 = vmul.f32 %v2084, 1.442695
        %v2118 = vpow.pop %v2117
        %v2119 = vmul.f32 %v2085, 1.442695
        %v2120 = vpow.pop %v2119
        %v2121 = vmul.f32 %v2086, 1.442695
        %v2122 = vpow.pop %v2121
        %v2123 = vmul.f32 %v2087, 1.442695
        %v2124 = vpow.pop %v2123
        %v2125 = vmul.f32 %v2088, 1.442695
        %v2126 = vpow.pop %v2125
        %v2127 = vmul.f32 %v2089, 1.442695
        %v2128 = vpow.pop %v2127
        %v2129 = vmul.f32 %v2090, 1.442695
        %v2130 = vpow.pop %v2129
        %v2131 = vmul.f32 %v2091, 1.442695
        %v2132 = vpow.pop %v2131
        %v2133 = vmul.f32 %v2092, 1.442695
        %v2134 = vpow.pop %v2133
        %v2135 = vmul.f32 %v2093, 1.442695
        %v2136 = vpow.pop %v2135
        %v2137 = vmul.f32 %v2094, 1.442695
        %v2138 = vpow.pop %v2137
        %v2139 = vmul.f32 %v2095, 1.442695
        %v2140 = vpow.pop %v2139
        %v2141 = vmul.f32 %v2096, 1.442695
        %v2142 = vpow.pop %v2141
        %v2143 = vmul.f32 %v2097, 1.442695
        %v2144 = vpow.pop %v2143
        %v2145 = vmul.f32 %v2098, 1.442695
        %v2146 = vpow.pop %v2145
        %v2147 = vmul.f32 %v2099, 1.442695
        %v2148 = vpow.pop %v2147
        %v2149 = vmul.f32 %v2100, 1.442695
        %v2150 = vpow.pop %v2149
        %v2151 = vmul.f32 %v2101, 1.442695
        %v2152 = vpow.pop %v2151
        %v2153 = vmul.f32 %v2102, 1.442695
        %v2154 = vpow.pop %v2153
        %v2155 = vmul.f32 %v2103, 1.442695
        %v2156 = vpow.pop %v2155
        %v2157 = vmul.f32 %v2104, 1.442695
        %v2158 = vpow.pop %v2157
        %v2159 = vmul.f32 %v2105, 1.442695
        %v2160 = vpow.pop %v2159
        %v2161 = vmul.f32 %v2106, 1.442695
        %v2162 = vpow.pop %v2161
        %v2163 = vmul.f32 %v2107, 1.442695
        %v2164 = vpow.pop %v2163
        %v2165 = vmul.f32 %v2108, 1.442695
        %v2166 = vpow.pop %v2165
        %v2167 = vmul.f32 %v2109, 1.442695
        %v2168 = vpow.pop %v2167
        %v2169 = vmul.f32 %v2110, 1.442695
        %v2170 = vpow.pop %v2169
        %v2171 = vmul.f32 %v2111, 1.442695
        %v2172 = vpow.pop %v2171
        %v2173 = vmul.f32 %v2112, 1.442695
        %v2174 = vpow.pop %v2173
        %v2175 = vmul.f32 %v2113, 1.442695
        %v2176 = vpow.pop %v2175
        %v2177 = vmul.f32 %v2114, 1.442695
        %v2178 = vpow.pop %v2177
        %v2179 = vadd.f32 %v2116, 1.0
        %v2180 = vadd.f32 %v2118, 1.0
        %v2181 = vadd.f32 %v2120, 1.0
        %v2182 = vadd.f32 %v2122, 1.0
        %v2183 = vadd.f32 %v2124, 1.0
        %v2184 = vadd.f32 %v2126, 1.0
        %v2185 = vadd.f32 %v2128, 1.0
        %v2186 = vadd.f32 %v2130, 1.0
        %v2187 = vadd.f32 %v2132, 1.0
        %v2188 = vadd.f32 %v2134, 1.0
        %v2189 = vadd.f32 %v2136, 1.0
        %v2190 = vadd.f32 %v2138, 1.0
        %v2191 = vadd.f32 %v2140, 1.0
        %v2192 = vadd.f32 %v2142, 1.0
        %v2193 = vadd.f32 %v2144, 1.0
        %v2194 = vadd.f32 %v2146, 1.0
        %v2195 = vadd.f32 %v2148, 1.0
        %v2196 = vadd.f32 %v2150, 1.0
        %v2197 = vadd.f32 %v2152, 1.0
        %v2198 = vadd.f32 %v2154, 1.0
        %v2199 = vadd.f32 %v2156, 1.0
        %v2200 = vadd.f32 %v2158, 1.0
        %v2201 = vadd.f32 %v2160, 1.0
        %v2202 = vadd.f32 %v2162, 1.0
        %v2203 = vadd.f32 %v2164, 1.0
        %v2204 = vadd.f32 %v2166, 1.0
        %v2205 = vadd.f32 %v2168, 1.0
        %v2206 = vadd.f32 %v2170, 1.0
        %v2207 = vadd.f32 %v2172, 1.0
        %v2208 = vadd.f32 %v2174, 1.0
        %v2209 = vadd.f32 %v2176, 1.0
        %v2210 = vadd.f32 %v2178, 1.0
        %v2211 = vrcp.pop %v2179
        %v2212 = vmul.f32 1.0, %v2211
        %v2213 = vrcp.pop %v2180
        %v2214 = vmul.f32 1.0, %v2213
        %v2215 = vrcp.pop %v2181
        %v2216 = vmul.f32 1.0, %v2215
        %v2217 = vrcp.pop %v2182
        %v2218 = vmul.f32 1.0, %v2217
        %v2219 = vrcp.pop %v2183
        %v2220 = vmul.f32 1.0, %v2219
        %v2221 = vrcp.pop %v2184
        %v2222 = vmul.f32 1.0, %v2221
        %v2223 = vrcp.pop %v2185
        %v2224 = vmul.f32 1.0, %v2223
        %v2225 = vrcp.pop %v2186
        %v2226 = vmul.f32 1.0, %v2225
        %v2227 = vrcp.pop %v2187
        %v2228 = vmul.f32 1.0, %v2227
        %v2229 = vrcp.pop %v2188
        %v2230 = vmul.f32 1.0, %v2229
        %v2231 = vrcp.pop %v2189
        %v2232 = vmul.f32 1.0, %v2231
        %v2233 = vrcp.pop %v2190
        %v2234 = vmul.f32 1.0, %v2233
        %v2235 = vrcp.pop %v2191
        %v2236 = vmul.f32 1.0, %v2235
        %v2237 = vrcp.pop %v2192
        %v2238 = vmul.f32 1.0, %v2237
        %v2239 = vrcp.pop %v2193
        %v2240 = vmul.f32 1.0, %v2239
        %v2241 = vrcp.pop %v2194
        %v2242 = vmul.f32 1.0, %v2241
        %v2243 = vrcp.pop %v2195
        %v2244 = vmul.f32 1.0, %v2243
        %v2245 = vrcp.pop %v2196
        %v2246 = vmul.f32 1.0, %v2245
        %v2247 = vrcp.pop %v2197
        %v2248 = vmul.f32 1.0, %v2247
        %v2249 = vrcp.pop %v2198
        %v2250 = vmul.f32 1.0, %v2249
        %v2251 = vrcp.pop %v2199
        %v2252 = vmul.f32 1.0, %v2251
        %v2253 = vrcp.pop %v2200
        %v2254 = vmul.f32 1.0, %v2253
        %v2255 = vrcp.pop %v2201
        %v2256 = vmul.f32 1.0, %v2255
        %v2257 = vrcp.pop %v2202
        %v2258 = vmul.f32 1.0, %v2257
        %v2259 = vrcp.pop %v2203
        %v2260 = vmul.f32 1.0, %v2259
        %v2261 = vrcp.pop %v2204
        %v2262 = vmul.f32 1.0, %v2261
        %v2263 = vrcp.pop %v2205
        %v2264 = vmul.f32 1.0, %v2263
        %v2265 = vrcp.pop %v2206
        %v2266 = vmul.f32 1.0, %v2265
        %v2267 = vrcp.pop %v2207
        %v2268 = vmul.f32 1.0, %v2267
        %v2269 = vrcp.pop %v2208
        %v2270 = vmul.f32 1.0, %v2269
        %v2271 = vrcp.pop %v2209
        %v2272 = vmul.f32 1.0, %v2271
        %v2273 = vrcp.pop %v2210
        %v2274 = vmul.f32 1.0, %v2273
        %2275 = vst [vmem:[%s644] sm:$0xff] %v2212
        %2276 = vst [vmem:[%s644 + $0x8] sm:$0xff] %v2214
        %2277 = vst [vmem:[%s644 + $0x10] sm:$0xff] %v2216
        %2278 = vst [vmem:[%s644 + $0x18] sm:$0xff] %v2218
        %2279 = vst [vmem:[%s644 + $0x20] sm:$0xff] %v2220
        %2280 = vst [vmem:[%s644 + $0x28] sm:$0xff] %v2222
        %2281 = vst [vmem:[%s644 + $0x30] sm:$0xff] %v2224
        %2282 = vst [vmem:[%s644 + $0x38] sm:$0xff] %v2226
        %2283 = vst [vmem:[%s644 + $0x40] sm:$0xff] %v2228
        %2284 = vst [vmem:[%s644 + $0x48] sm:$0xff] %v2230
        %2285 = vst [vmem:[%s644 + $0x50] sm:$0xff] %v2232
        %2286 = vst [vmem:[%s644 + $0x58] sm:$0xff] %v2234
        %2287 = vst [vmem:[%s644 + $0x60] sm:$0xff] %v2236
        %2288 = vst [vmem:[%s644 + $0x68] sm:$0xff] %v2238
        %2289 = vst [vmem:[%s644 + $0x70] sm:$0xff] %v2240
        %2290 = vst [vmem:[%s644 + $0x78] sm:$0xff] %v2242
        %2291 = vst [vmem:[%s644 + $0x80] sm:$0xff] %v2244
        %2292 = vst [vmem:[%s644 + $0x88] sm:$0xff] %v2246
        %2293 = vst [vmem:[%s644 + $0x90] sm:$0xff] %v2248
        %2294 = vst [vmem:[%s644 + $0x98] sm:$0xff] %v2250
        %2295 = vst [vmem:[%s644 + $0xa0] sm:$0xff] %v2252
        %2296 = vst [vmem:[%s644 + $0xa8] sm:$0xff] %v2254
        %2297 = vst [vmem:[%s644 + $0xb0] sm:$0xff] %v2256
        %2298 = vst [vmem:[%s644 + $0xb8] sm:$0xff] %v2258
        %2299 = vst [vmem:[%s644 + $0xc0] sm:$0xff] %v2260
        %2300 = vst [vmem:[%s644 + $0xc8] sm:$0xff] %v2262
        %2301 = vst [vmem:[%s644 + $0xd0] sm:$0xff] %v2264
        %2302 = vst [vmem:[%s644 + $0xd8] sm:$0xff] %v2266
        %2303 = vst [vmem:[%s644 + $0xe0] sm:$0xff] %v2268
        %2304 = vst [vmem:[%s644 + $0xe8] sm:$0xff] %v2270
        %2305 = vst [vmem:[%s644 + $0xf0] sm:$0xff] %v2272
        %2306 = vst [vmem:[%s644 + $0xf8] sm:$0xff] %v2274
        %2307 = vst [vmem:[%s651] sm:$0xff] %v1454
        %2308 = vst [vmem:[%s651 + $0x18] sm:$0xff] %v1455
        %2309 = vst [vmem:[%s651 + $0x30] sm:$0xff] %v1456
        %2310 = vst [vmem:[%s651 + $0x48] sm:$0xff] %v1457
        %2311 = vst [vmem:[%s651 + $0x60] sm:$0xff] %v1458
        %2312 = vst [vmem:[%s651 + $0x78] sm:$0xff] %v1459
        %2313 = vst [vmem:[%s651 + $0x90] sm:$0xff] %v1460
        %2314 = vst [vmem:[%s651 + $0xa8] sm:$0xff] %v1461
        %2315 = vst [vmem:[%s651 + $0xc0] sm:$0xff] %v1462
        %2316 = vst [vmem:[%s651 + $0xd8] sm:$0xff] %v1463
        %2317 = vst [vmem:[%s651 + $0xf0] sm:$0xff] %v1464
        %2318 = vst [vmem:[%s651 + $0x108] sm:$0xff] %v1465
        %2319 = vst [vmem:[%s651 + $0x120] sm:$0xff] %v1466
        %2320 = vst [vmem:[%s651 + $0x138] sm:$0xff] %v1467
        %2321 = vst [vmem:[%s651 + $0x150] sm:$0xff] %v1468
        %2322 = vst [vmem:[%s651 + $0x168] sm:$0xff] %v1469
        %2323 = vst [vmem:[%s651 + $0x8] sm:$0xff] %v1296
        %2324 = vst [vmem:[%s651 + $0x20] sm:$0xff] %v1300
        %2325 = vst [vmem:[%s651 + $0x38] sm:$0xff] %v1306
        %2326 = vst [vmem:[%s651 + $0x50] sm:$0xff] %v1310
        %2327 = vst [vmem:[%s651 + $0x68] sm:$0xff] %v1316
        %2328 = vst [vmem:[%s651 + $0x80] sm:$0xff] %v1320
        %2329 = vst [vmem:[%s651 + $0x98] sm:$0xff] %v1326
        %2330 = vst [vmem:[%s651 + $0xb0] sm:$0xff] %v1330
        %2331 = vst [vmem:[%s651 + $0xc8] sm:$0xff] %v1336
        %2332 = vst [vmem:[%s651 + $0xe0] sm:$0xff] %v1340
        %2333 = vst [vmem:[%s651 + $0xf8] sm:$0xff] %v1346
        %2334 = vst [vmem:[%s651 + $0x110] sm:$0xff] %v1350
        %2335 = vst [vmem:[%s651 + $0x128] sm:$0xff] %v1356
        %2336 = vst [vmem:[%s651 + $0x140] sm:$0xff] %v1360
        %2337 = vst [vmem:[%s651 + $0x158] sm:$0xff] %v1366
        %2338 = vst [vmem:[%s651 + $0x170] sm:$0xff] %v1370
        %2339 = vst [vmem:[%s651 + $0x10] sm:$0xff] %v1298
        %2340 = vst [vmem:[%s651 + $0x28] sm:$0xff] %v1302
        %2341 = vst [vmem:[%s651 + $0x40] sm:$0xff] %v1308
        %2342 = vst [vmem:[%s651 + $0x58] sm:$0xff] %v1312
        %2343 = vst [vmem:[%s651 + $0x70] sm:$0xff] %v1318
        %2344 = vst [vmem:[%s651 + $0x88] sm:$0xff] %v1322
        %2345 = vst [vmem:[%s651 + $0xa0] sm:$0xff] %v1328
        %2346 = vst [vmem:[%s651 + $0xb8] sm:$0xff] %v1332
        %2347 = vst [vmem:[%s651 + $0xd0] sm:$0xff] %v1338
        %2348 = vst [vmem:[%s651 + $0xe8] sm:$0xff] %v1342
        %2349 = vst [vmem:[%s651 + $0x100] sm:$0xff] %v1348
        %2350 = vst [vmem:[%s651 + $0x118] sm:$0xff] %v1352
        %2351 = vst [vmem:[%s651 + $0x130] sm:$0xff] %v1358
        %2352 = vst [vmem:[%s651 + $0x148] sm:$0xff] %v1362
        %2353 = vst [vmem:[%s651 + $0x160] sm:$0xff] %v1368
        %2354 = vst [vmem:[%s651 + $0x178] sm:$0xff] %v1372
        %s2355 = sand.u32 %s354, 1
        %s2356 = scalar_lea.sflag [#allocation4], %s2355
        %s2357 = sand.u32 %s354, 1
        %s2358 = smul.addr %s2357, 256
        %s2359 = scalar_lea.vmem [#allocation16], %s2358
        %s2360 = sand.u32 %s380, 1
        %s2361 = scalar_lea.sflag [#allocation18], %s2360
        %s2362 = sand.u32 %s380, 1
        %s2363 = smul.addr %s2362, 384
        %s2364 = scalar_lea.vmem [#allocation17], %s2363
        // Predicated region
        $region109: #{tpu_custom_call.1} parent=75 // pred_check
          %p2365 = pneg %p364
        $region110: #{tpu_custom_call.1} parent=75 // pred_check_branch
          %2367 = sbr.rel (%p2365) target = $region112
        $region111: #{tpu_custom_call.1} parent=75 // pred_region
          %s2368 = smul.u32 16, %s42
          %s2370 = ssub.s32 4096, 4096
          %2371 = vsyncadd %s2356, %s2370
          %s2372 = smul.addr %s2368, 2
          %s2373 = smul.addr %s2372, 128
          %s2374 = scalar_lea.hbm %s14, %s2373
          %s2375 = sshll.u32 %s2359, 4
          %s2376 = int_to_ptr.vmem [resolvable:$true] %s2375
          %2381 = dma.vmem_to_hbm [thread:$0]  %s2376, 4096, %s2374, %s2356, 256, 256, 16
        $region112: #{tpu_custom_call.1} parent=75 // pred_fallthru
          _
        // Predicated region
        $region113: #{tpu_custom_call.1} parent=75 // pred_check
          %p2382 = pneg %p390
        $region114: #{tpu_custom_call.1} parent=75 // pred_check_branch
          %2384 = sbr.rel (%p2382) target = $region116
        $region115: #{tpu_custom_call.1} parent=75 // pred_region
          %s2385 = smul.u32 16, %s42
          %s2387 = ssub.s32 6144, 6144
          %2388 = vsyncadd %s2361, %s2387
          %s2389 = smul.addr %s2385, 3
          %s2390 = smul.addr %s2389, 128
          %s2391 = scalar_lea.hbm %s15, %s2390
          %s2392 = sshll.u32 %s2364, 4
          %s2393 = int_to_ptr.vmem [resolvable:$true] %s2392
          %2398 = dma.vmem_to_hbm [thread:$0]  %s2393, 6144, %s2391, %s2361, 384, 384, 24
        $region116: #{tpu_custom_call.1} parent=75 // pred_fallthru
          _
      $region76: #{tpu_custom_call.1} parent=5 // pred_fallthru
        _
      %p2399 = scmp.le.s32.totalorder 2, %s37
      // Predicated region
      $region117: #{tpu_custom_call.1} parent=5 // pred_check
        %p2400 = pneg %p2399
      $region118: #{tpu_custom_call.1} parent=5 // pred_check_branch
        %2402 = sbr.rel (%p2400) target = $region120
      $region119: #{tpu_custom_call.1} parent=5 // pred_region
        %s2403 = ssub.s32 %s37, 2
        // Predicated region
        $region121: #{tpu_custom_call.1} parent=119 // pred_check
          %p2404 = pneg %p370
        $region122: #{tpu_custom_call.1} parent=119 // pred_check_branch
          %2406 = sbr.rel (%p2404) target = $region124
        $region123: #{tpu_custom_call.1} parent=119 // pred_region
          %s2407 = sand.u32 %s355, 1
          %s2408 = scalar_lea.sflag [#allocation4], %s2407
          %s2409 = sand.u32 %s355, 1
          %s2410 = smul.addr %s2409, 256
          %s2411 = scalar_lea.vmem [#allocation16], %s2410
          %2412 = dma.done %s2408, 4096
        $region124: #{tpu_custom_call.1} parent=119 // pred_fallthru
          _
        // Predicated region
        $region125: #{tpu_custom_call.1} parent=119 // pred_check
          %p2413 = pneg %p396
        $region126: #{tpu_custom_call.1} parent=119 // pred_check_branch
          %2415 = sbr.rel (%p2413) target = $region128
        $region127: #{tpu_custom_call.1} parent=119 // pred_region
          %s2416 = sand.u32 %s381, 1
          %s2417 = scalar_lea.sflag [#allocation18], %s2416
          %s2418 = sand.u32 %s381, 1
          %s2419 = smul.addr %s2418, 384
          %s2420 = scalar_lea.vmem [#allocation17], %s2419
          %2421 = dma.done %s2417, 6144
        $region128: #{tpu_custom_call.1} parent=119 // pred_fallthru
          _
      $region120: #{tpu_custom_call.1} parent=5 // pred_fallthru
        _
    $region6: #{tpu_custom_call.1} parent=1 // loop_footer
      %s41 = sadd.s32 1, %s37
    $region7: #{tpu_custom_call.1} parent=1 // loop_footer_branch
      %36 = sbr.rel target = $region3
    $region8: #{tpu_custom_call.1} parent=1 // loop_exit
      _
    %2422 = vsyncpa [#allocation3], 1
    %s2423 = scalar_lea.sflag [#allocation3], 1
    %2424 = vsyncpa %s2423, 1
    %2425 = vsyncpa [#allocation6], 1
    %s2426 = scalar_lea.sflag [#allocation6], 1
    %2427 = vsyncpa %s2426, 1
    %2428 = vsyncpa [#allocation9], 1
    %2429 = vsyncpa [#allocation12], 1
    %2430 = vsyncpa [#allocation15], 1
    %2431 = vsyncpa [#allocation4], 1
    %s2432 = scalar_lea.sflag [#allocation4], 1
    %2433 = vsyncpa %s2432, 1
    %2434 = vsyncpa [#allocation18], 1
    %s2435 = scalar_lea.sflag [#allocation18], 1
    %2436 = vsyncpa %s2435, 1

</llo_original>
